<compile_context>
chip_gen: v7x
topology: tpu7x:2x2x1
jax: 0.10.0
libtpu: 0.0.40
codegen_flags: <defaults>
</compile_context>

<pallas_src>
import jax
import jax.numpy as jnp
from jax.experimental import pallas as pl
from jax.experimental.pallas import tpu as pltpu

KH1, C1 = 10, 3   # layer1 kernel height, out channels
KH2, C2 = 3, 2    # layer2 kernel height, out channels
EPS = 1e-5
LANES = 128


def convnet_kernel(nb_ref, x_ref,
                   w1_ref, b1_ref, g1_ref, be1_ref,
                   w2_ref, b2_ref, g2_ref, be2_ref,
                   wfct_ref, bfc_ref,
                   out_ref, l2_ref, l1_ref):
    # x_ref   : [H0, Bp]      f32 VMEM (batch on lanes, zero-padded)
    # wfct_ref: [C2, NC, H2]  f32 VMEM (fc weight, channel-split & transposed)
    # bfc_ref : [NC, 1]       f32 VMEM
    # nb_ref  : [1] int32 SMEM (true batch size); small conv/BN params in SMEM.
    # out_ref : [NC, Bp]; l2_ref: [C2, H2, Bp]; l1_ref: [C1, H1, Bp]
    x = x_ref[...]
    H0, Bp = x.shape
    H1 = H0 - KH1 + 1
    H2 = H1 - KH2 + 1
    NC = out_ref.shape[0]

    # Valid-lane mask: padded batch columns must not bias the BN statistics.
    n_valid = nb_ref[0]
    col = jax.lax.broadcasted_iota(jnp.int32, (1, Bp), 1)
    mask = (col < n_valid).astype(jnp.float32)                 # [1, Bp]
    nf = n_valid.astype(jnp.float32)
    inv_n1 = 1.0 / (nf * float(H1))
    inv_n2 = 1.0 / (nf * float(H2))

    # Hoist every scalar parameter out of the tap loops (one SMEM read each).
    w1 = [[w1_ref[k, c] for k in range(KH1)] for c in range(C1)]
    b1 = [b1_ref[c] for c in range(C1)]
    g1 = [g1_ref[c] for c in range(C1)]
    be1 = [be1_ref[c] for c in range(C1)]
    w2 = [[[w2_ref[k * C1 + ci, co] for k in range(KH2)] for ci in range(C1)]
          for co in range(C2)]
    b2 = [b2_ref[co] for co in range(C2)]
    g2 = [g2_ref[co] for co in range(C2)]
    be2 = [be2_ref[co] for co in range(C2)]

    def batchnorm_tanh(acc, gamma, beta, inv_n):
        # One fused pass: sum and sum-of-squares over the valid lanes only.
        accm = acc * mask
        s = jnp.sum(accm)
        sq = jnp.sum(accm * accm)
        m = s * inv_n
        v = sq * inv_n - m * m                                  # biased variance
        return jnp.tanh((acc - m) * (jax.lax.rsqrt(v + EPS) * gamma) + beta)

    # ---------- layer1: conv(1->3, kh=10) + BN(batch stats) + tanh ----------
    t1 = []
    for c in range(C1):
        acc = jnp.full((H1, Bp), b1[c], jnp.float32)
        for k in range(KH1):
            acc = acc + x[k:k + H1, :] * w1[c][k]               # sublane slice
        a = batchnorm_tanh(acc, g1[c], be1[c], inv_n1)
        t1.append(a)
        l1_ref[c] = a                                           # lane-dense slab store

    # ---------- layer2: conv(3->2, kh=3) + BN(batch stats) + tanh ----------
    t2 = []
    for co in range(C2):
        acc = jnp.full((H2, Bp), b2[co], jnp.float32)
        for ci in range(C1):
            for k in range(KH2):
                acc = acc + t1[ci][k:k + H2, :] * w2[co][ci][k]
        a = batchnorm_tanh(acc, g2[co], be2[co], inv_n2)
        t2.append(a)
        l2_ref[co] = a                                          # lane-dense slab store

    # ---------- fc ----------
    # torch flattens layer2_out channel-major; with wfct[c] = fc.weight[:, c*H2:(c+1)*H2]
    # the per-channel partial dots reproduce exactly that, without a lane-axis concat.
    acc_fc = jnp.broadcast_to(bfc_ref[...], (NC, Bp))
    for c in range(C2):
        acc_fc = acc_fc + jnp.dot(wfct_ref[c], t2[c],
                                  preferred_element_type=jnp.float32)
    out_ref[...] = acc_fc


def convnet_forward(x_nchw, params):
    """x_nchw: [B, 1, num_features, 1] -> (fc_out, layer2_out_nchw, layer1_out_nchw)."""
    B = x_nchw.shape[0]
    H0 = x_nchw.shape[2]
    H1 = H0 - KH1 + 1
    H2 = H1 - KH2 + 1
    NC = params["bfc"].shape[-1]
    Bp = max(LANES, ((B + LANES - 1) // LANES) * LANES)

    # [B,1,H0,1] -> [H0, B] (batch on lanes), zero-pad lanes to a 128 multiple.
    x_t = x_nchw.reshape(B, H0).astype(jnp.float32).T
    x_t = jnp.pad(x_t, ((0, 0), (0, Bp - B)))

    # fc weight [C2*H2, NC] -> [C2, NC, H2]; bias -> column vector [NC, 1].
    wfct = params["wfc"].reshape(C2, H2, NC).transpose(0, 2, 1).astype(jnp.float32)
    bfc_col = params["bfc"].reshape(NC, 1).astype(jnp.float32)
    n_valid = jnp.array([B], jnp.int32)

    vmem = pl.BlockSpec(memory_space=pltpu.MemorySpace.VMEM)
    smem = pl.BlockSpec(memory_space=pltpu.MemorySpace.SMEM)

    out_t, l2_t, l1_t = pl.pallas_call(
        convnet_kernel,
        out_shape=(
            jax.ShapeDtypeStruct((NC, Bp), jnp.float32),     # fc out (transposed)
            jax.ShapeDtypeStruct((C2, H2, Bp), jnp.float32),  # layer2_out (C,H,B)
            jax.ShapeDtypeStruct((C1, H1, Bp), jnp.float32),  # layer1_out (C,H,B)
        ),
        in_specs=[smem, vmem,                 # n_valid, x
                  smem, smem, smem, smem,     # w1, b1, gamma1, beta1
                  smem, smem, smem, smem,     # w2, b2, gamma2, beta2
                  vmem, vmem],                # wfc (transposed), bfc
        out_specs=(vmem, vmem, vmem),
    )(n_valid, x_t,
      params["w1"], params["b1"], params["g1"], params["be1"],
      params["w2"], params["b2"], params["g2"], params["be2"],
      wfct, bfc_col)

    # Layout plumbing back to the PyTorch shapes (slice padding, restore NCHW).
    out = out_t[:, :B].T
    l2 = l2_t[:, :, :B].transpose(2, 0, 1)[..., None]
    l1 = l1_t[:, :, :B].transpose(2, 0, 1)[..., None]
    return out, l2, l1


def convnet_reference(x_nchw, params):
    """Pure-JAX reference (same math, original [B, H] layout) for validation."""
    B, _, H0, _ = x_nchw.shape
    H1 = H0 - KH1 + 1
    H2 = H1 - KH2 + 1
    x = x_nchw.reshape(B, H0).astype(jnp.float32)

    l1 = []
    for c in range(C1):
        acc = sum(x[:, k:k + H1] * params["w1"][k, c] for k in range(KH1)) + params["b1"][c]
        m = jnp.mean(acc)
        v = jnp.mean((acc - m) ** 2)
        l1.append(jnp.tanh((acc - m) * jax.lax.rsqrt(v + EPS) * params["g1"][c] + params["be1"][c]))
    l2 = []
    for co in range(C2):
        acc = sum(l1[ci][:, k:k + H2] * params["w2"][k * C1 + ci, co]
                  for k in range(KH2) for ci in range(C1)) + params["b2"][co]
        m = jnp.mean(acc)
        v = jnp.mean((acc - m) ** 2)
        l2.append(jnp.tanh((acc - m) * jax.lax.rsqrt(v + EPS) * params["g2"][co] + params["be2"][co]))
    flat = jnp.concatenate(l2, axis=-1)
    out = jnp.dot(flat, params["wfc"], precision=jax.lax.Precision.HIGHEST) + params["bfc"]
    return out, jnp.stack(l2, axis=1)[..., None], jnp.stack(l1, axis=1)[..., None]


def init_params(key, num_features=60, num_classes=10):
    ks = jax.random.split(key, 6)
    H2 = num_features - (KH1 - 1) - (KH2 - 1)
    # w1[k, c]        == torch_conv1.weight[c, 0, k, 0]
    # w2[k*3+ci, co]  == torch_conv2.weight[co, ci, k, 0]
    # wfc[c*H2+h, o]  == torch_fc.weight[o, c*H2+h]   (i.e. fc.weight.T)
    return dict(
        w1=0.1 * jax.random.normal(ks[0], (KH1, C1), jnp.float32),
        b1=0.1 * jax.random.normal(ks[1], (C1,), jnp.float32),
        g1=jnp.ones((C1,), jnp.float32),
        be1=jnp.zeros((C1,), jnp.float32),
        w2=0.1 * jax.random.normal(ks[2], (KH2 * C1, C2), jnp.float32),
        b2=0.1 * jax.random.normal(ks[3], (C2,), jnp.float32),
        g2=jnp.ones((C2,), jnp.float32),
        be2=jnp.zeros((C2,), jnp.float32),
        wfc=0.1 * jax.random.normal(ks[4], (C2 * H2, num_classes), jnp.float32),
        bfc=0.1 * jax.random.normal(ks[5], (1, num_classes), jnp.float32),
    )


if __name__ == "__main__":
    B, NUM_FEATURES, NUM_CLASSES = 2, 60, 10

    key = jax.random.PRNGKey(0)
    kp, kx = jax.random.split(key)
    params = init_params(kp, NUM_FEATURES, NUM_CLASSES)

    # PyTorch feeds x.view([B, 1, -1, 1]) -> NCHW [B, 1, 60, 1]
    x = jax.random.normal(kx, (B, 1, NUM_FEATURES, 1), jnp.float32)

    out, layer2_out, layer1_out = convnet_forward(x, params)
    jax.block_until_ready((out, layer2_out, layer1_out))

    assert out.shape == (B, NUM_CLASSES)
    assert layer2_out.shape == (B, 2, NUM_FEATURES - 11, 1)
    assert layer1_out.shape == (B, 3, NUM_FEATURES - 9, 1)

    # Numerical check against a pure-JAX reference (loose tolerance: EUP/MXU vs XLA).
    ref_out, ref_l2, ref_l1 = convnet_reference(x, params)
    assert float(jnp.max(jnp.abs(out - ref_out))) < 5e-2
    assert float(jnp.max(jnp.abs(layer2_out - ref_l2))) < 1e-2
    assert float(jnp.max(jnp.abs(layer1_out - ref_l1))) < 1e-2

    # TODO(synk): training loop / CrossEntropyLoss / Adam from the module are not
    # part of the forward pass and are intentionally not implemented.
    print("KERNEL_OK")
</pallas_src>

<mosaic_0001>
module attributes {stable_mosaic.version = 11 : i64} {
  func.func @convnet_kernel(%arg0: memref<1xi32, #tpu.memory_space<smem>>, %arg1: memref<60x128xf32, #tpu.memory_space<vmem>>, %arg2: memref<10x3xf32, #tpu.memory_space<smem>>, %arg3: memref<3xf32, #tpu.memory_space<smem>>, %arg4: memref<3xf32, #tpu.memory_space<smem>>, %arg5: memref<3xf32, #tpu.memory_space<smem>>, %arg6: memref<9x2xf32, #tpu.memory_space<smem>>, %arg7: memref<2xf32, #tpu.memory_space<smem>>, %arg8: memref<2xf32, #tpu.memory_space<smem>>, %arg9: memref<2xf32, #tpu.memory_space<smem>>, %arg10: memref<2x10x49xf32, #tpu.memory_space<vmem>>, %arg11: memref<10x1xf32, #tpu.memory_space<vmem>>, %arg12: memref<10x128xf32, #tpu.memory_space<vmem>>, %arg13: memref<2x49x128xf32, #tpu.memory_space<vmem>>, %arg14: memref<3x51x128xf32, #tpu.memory_space<vmem>>) attributes {dimension_semantics = [], scalar_prefetch = 0 : i64, scratch_operands = 0 : i64, tpu.core_type = #tpu.core_type<tc>} {
    %c0 = arith.constant 0 : index
    %c0_0 = arith.constant 0 : index
    %0 = vector.load %arg1[%c0, %c0_0] : memref<60x128xf32, #tpu.memory_space<vmem>>, vector<60x128xf32>
    %c0_1 = arith.constant 0 : index
    %1 = memref.load %arg0[%c0_1] : memref<1xi32, #tpu.memory_space<smem>>
    %2 = tpu.iota {dimensions = array<i32: 1>} : vector<1x128xi32>
    %3 = vector.broadcast %1 : i32 to vector<1x128xi32>
    %4 = arith.cmpi slt, %2, %3 : vector<1x128xi32>
    %5 = arith.extui %4 : vector<1x128xi1> to vector<1x128xi32>
    %6 = arith.sitofp %5 : vector<1x128xi32> to vector<1x128xf32>
    %7 = arith.sitofp %1 : i32 to f32
    %cst = arith.constant 5.100000e+01 : f32
    %8 = arith.mulf %7, %cst : f32
    %cst_2 = arith.constant 1.000000e+00 : f32
    %9 = arith.divf %cst_2, %8 : f32
    %cst_3 = arith.constant 4.900000e+01 : f32
    %10 = arith.mulf %7, %cst_3 : f32
    %cst_4 = arith.constant 1.000000e+00 : f32
    %11 = arith.divf %cst_4, %10 : f32
    %c0_5 = arith.constant 0 : index
    %c0_6 = arith.constant 0 : index
    %12 = memref.load %arg2[%c0_5, %c0_6] : memref<10x3xf32, #tpu.memory_space<smem>>
    %c1 = arith.constant 1 : index
    %c0_7 = arith.constant 0 : index
    %13 = memref.load %arg2[%c1, %c0_7] : memref<10x3xf32, #tpu.memory_space<smem>>
    %c2 = arith.constant 2 : index
    %c0_8 = arith.constant 0 : index
    %14 = memref.load %arg2[%c2, %c0_8] : memref<10x3xf32, #tpu.memory_space<smem>>
    %c3 = arith.constant 3 : index
    %c0_9 = arith.constant 0 : index
    %15 = memref.load %arg2[%c3, %c0_9] : memref<10x3xf32, #tpu.memory_space<smem>>
    %c4 = arith.constant 4 : index
    %c0_10 = arith.constant 0 : index
    %16 = memref.load %arg2[%c4, %c0_10] : memref<10x3xf32, #tpu.memory_space<smem>>
    %c5 = arith.constant 5 : index
    %c0_11 = arith.constant 0 : index
    %17 = memref.load %arg2[%c5, %c0_11] : memref<10x3xf32, #tpu.memory_space<smem>>
    %c6 = arith.constant 6 : index
    %c0_12 = arith.constant 0 : index
    %18 = memref.load %arg2[%c6, %c0_12] : memref<10x3xf32, #tpu.memory_space<smem>>
    %c7 = arith.constant 7 : index
    %c0_13 = arith.constant 0 : index
    %19 = memref.load %arg2[%c7, %c0_13] : memref<10x3xf32, #tpu.memory_space<smem>>
    %c8 = arith.constant 8 : index
    %c0_14 = arith.constant 0 : index
    %20 = memref.load %arg2[%c8, %c0_14] : memref<10x3xf32, #tpu.memory_space<smem>>
    %c9 = arith.constant 9 : index
    %c0_15 = arith.constant 0 : index
    %21 = memref.load %arg2[%c9, %c0_15] : memref<10x3xf32, #tpu.memory_space<smem>>
    %c0_16 = arith.constant 0 : index
    %c1_17 = arith.constant 1 : index
    %22 = memref.load %arg2[%c0_16, %c1_17] : memref<10x3xf32, #tpu.memory_space<smem>>
    %c1_18 = arith.constant 1 : index
    %c1_19 = arith.constant 1 : index
    %23 = memref.load %arg2[%c1_18, %c1_19] : memref<10x3xf32, #tpu.memory_space<smem>>
    %c2_20 = arith.constant 2 : index
    %c1_21 = arith.constant 1 : index
    %24 = memref.load %arg2[%c2_20, %c1_21] : memref<10x3xf32, #tpu.memory_space<smem>>
    %c3_22 = arith.constant 3 : index
    %c1_23 = arith.constant 1 : index
    %25 = memref.load %arg2[%c3_22, %c1_23] : memref<10x3xf32, #tpu.memory_space<smem>>
    %c4_24 = arith.constant 4 : index
    %c1_25 = arith.constant 1 : index
    %26 = memref.load %arg2[%c4_24, %c1_25] : memref<10x3xf32, #tpu.memory_space<smem>>
    %c5_26 = arith.constant 5 : index
    %c1_27 = arith.constant 1 : index
    %27 = memref.load %arg2[%c5_26, %c1_27] : memref<10x3xf32, #tpu.memory_space<smem>>
    %c6_28 = arith.constant 6 : index
    %c1_29 = arith.constant 1 : index
    %28 = memref.load %arg2[%c6_28, %c1_29] : memref<10x3xf32, #tpu.memory_space<smem>>
    %c7_30 = arith.constant 7 : index
    %c1_31 = arith.constant 1 : index
    %29 = memref.load %arg2[%c7_30, %c1_31] : memref<10x3xf32, #tpu.memory_space<smem>>
    %c8_32 = arith.constant 8 : index
    %c1_33 = arith.constant 1 : index
    %30 = memref.load %arg2[%c8_32, %c1_33] : memref<10x3xf32, #tpu.memory_space<smem>>
    %c9_34 = arith.constant 9 : index
    %c1_35 = arith.constant 1 : index
    %31 = memref.load %arg2[%c9_34, %c1_35] : memref<10x3xf32, #tpu.memory_space<smem>>
    %c0_36 = arith.constant 0 : index
    %c2_37 = arith.constant 2 : index
    %32 = memref.load %arg2[%c0_36, %c2_37] : memref<10x3xf32, #tpu.memory_space<smem>>
    %c1_38 = arith.constant 1 : index
    %c2_39 = arith.constant 2 : index
    %33 = memref.load %arg2[%c1_38, %c2_39] : memref<10x3xf32, #tpu.memory_space<smem>>
    %c2_40 = arith.constant 2 : index
    %c2_41 = arith.constant 2 : index
    %34 = memref.load %arg2[%c2_40, %c2_41] : memref<10x3xf32, #tpu.memory_space<smem>>
    %c3_42 = arith.constant 3 : index
    %c2_43 = arith.constant 2 : index
    %35 = memref.load %arg2[%c3_42, %c2_43] : memref<10x3xf32, #tpu.memory_space<smem>>
    %c4_44 = arith.constant 4 : index
    %c2_45 = arith.constant 2 : index
    %36 = memref.load %arg2[%c4_44, %c2_45] : memref<10x3xf32, #tpu.memory_space<smem>>
    %c5_46 = arith.constant 5 : index
    %c2_47 = arith.constant 2 : index
    %37 = memref.load %arg2[%c5_46, %c2_47] : memref<10x3xf32, #tpu.memory_space<smem>>
    %c6_48 = arith.constant 6 : index
    %c2_49 = arith.constant 2 : index
    %38 = memref.load %arg2[%c6_48, %c2_49] : memref<10x3xf32, #tpu.memory_space<smem>>
    %c7_50 = arith.constant 7 : index
    %c2_51 = arith.constant 2 : index
    %39 = memref.load %arg2[%c7_50, %c2_51] : memref<10x3xf32, #tpu.memory_space<smem>>
    %c8_52 = arith.constant 8 : index
    %c2_53 = arith.constant 2 : index
    %40 = memref.load %arg2[%c8_52, %c2_53] : memref<10x3xf32, #tpu.memory_space<smem>>
    %c9_54 = arith.constant 9 : index
    %c2_55 = arith.constant 2 : index
    %41 = memref.load %arg2[%c9_54, %c2_55] : memref<10x3xf32, #tpu.memory_space<smem>>
    %c0_56 = arith.constant 0 : index
    %42 = memref.load %arg3[%c0_56] : memref<3xf32, #tpu.memory_space<smem>>
    %c1_57 = arith.constant 1 : index
    %43 = memref.load %arg3[%c1_57] : memref<3xf32, #tpu.memory_space<smem>>
    %c2_58 = arith.constant 2 : index
    %44 = memref.load %arg3[%c2_58] : memref<3xf32, #tpu.memory_space<smem>>
    %c0_59 = arith.constant 0 : index
    %45 = memref.load %arg4[%c0_59] : memref<3xf32, #tpu.memory_space<smem>>
    %c1_60 = arith.constant 1 : index
    %46 = memref.load %arg4[%c1_60] : memref<3xf32, #tpu.memory_space<smem>>
    %c2_61 = arith.constant 2 : index
    %47 = memref.load %arg4[%c2_61] : memref<3xf32, #tpu.memory_space<smem>>
    %c0_62 = arith.constant 0 : index
    %48 = memref.load %arg5[%c0_62] : memref<3xf32, #tpu.memory_space<smem>>
    %c1_63 = arith.constant 1 : index
    %49 = memref.load %arg5[%c1_63] : memref<3xf32, #tpu.memory_space<smem>>
    %c2_64 = arith.constant 2 : index
    %50 = memref.load %arg5[%c2_64] : memref<3xf32, #tpu.memory_space<smem>>
    %c0_65 = arith.constant 0 : index
    %c0_66 = arith.constant 0 : index
    %51 = memref.load %arg6[%c0_65, %c0_66] : memref<9x2xf32, #tpu.memory_space<smem>>
    %c3_67 = arith.constant 3 : index
    %c0_68 = arith.constant 0 : index
    %52 = memref.load %arg6[%c3_67, %c0_68] : memref<9x2xf32, #tpu.memory_space<smem>>
    %c6_69 = arith.constant 6 : index
    %c0_70 = arith.constant 0 : index
    %53 = memref.load %arg6[%c6_69, %c0_70] : memref<9x2xf32, #tpu.memory_space<smem>>
    %c1_71 = arith.constant 1 : index
    %c0_72 = arith.constant 0 : index
    %54 = memref.load %arg6[%c1_71, %c0_72] : memref<9x2xf32, #tpu.memory_space<smem>>
    %c4_73 = arith.constant 4 : index
    %c0_74 = arith.constant 0 : index
    %55 = memref.load %arg6[%c4_73, %c0_74] : memref<9x2xf32, #tpu.memory_space<smem>>
    %c7_75 = arith.constant 7 : index
    %c0_76 = arith.constant 0 : index
    %56 = memref.load %arg6[%c7_75, %c0_76] : memref<9x2xf32, #tpu.memory_space<smem>>
    %c2_77 = arith.constant 2 : index
    %c0_78 = arith.constant 0 : index
    %57 = memref.load %arg6[%c2_77, %c0_78] : memref<9x2xf32, #tpu.memory_space<smem>>
    %c5_79 = arith.constant 5 : index
    %c0_80 = arith.constant 0 : index
    %58 = memref.load %arg6[%c5_79, %c0_80] : memref<9x2xf32, #tpu.memory_space<smem>>
    %c8_81 = arith.constant 8 : index
    %c0_82 = arith.constant 0 : index
    %59 = memref.load %arg6[%c8_81, %c0_82] : memref<9x2xf32, #tpu.memory_space<smem>>
    %c0_83 = arith.constant 0 : index
    %c1_84 = arith.constant 1 : index
    %60 = memref.load %arg6[%c0_83, %c1_84] : memref<9x2xf32, #tpu.memory_space<smem>>
    %c3_85 = arith.constant 3 : index
    %c1_86 = arith.constant 1 : index
    %61 = memref.load %arg6[%c3_85, %c1_86] : memref<9x2xf32, #tpu.memory_space<smem>>
    %c6_87 = arith.constant 6 : index
    %c1_88 = arith.constant 1 : index
    %62 = memref.load %arg6[%c6_87, %c1_88] : memref<9x2xf32, #tpu.memory_space<smem>>
    %c1_89 = arith.constant 1 : index
    %c1_90 = arith.constant 1 : index
    %63 = memref.load %arg6[%c1_89, %c1_90] : memref<9x2xf32, #tpu.memory_space<smem>>
    %c4_91 = arith.constant 4 : index
    %c1_92 = arith.constant 1 : index
    %64 = memref.load %arg6[%c4_91, %c1_92] : memref<9x2xf32, #tpu.memory_space<smem>>
    %c7_93 = arith.constant 7 : index
    %c1_94 = arith.constant 1 : index
    %65 = memref.load %arg6[%c7_93, %c1_94] : memref<9x2xf32, #tpu.memory_space<smem>>
    %c2_95 = arith.constant 2 : index
    %c1_96 = arith.constant 1 : index
    %66 = memref.load %arg6[%c2_95, %c1_96] : memref<9x2xf32, #tpu.memory_space<smem>>
    %c5_97 = arith.constant 5 : index
    %c1_98 = arith.constant 1 : index
    %67 = memref.load %arg6[%c5_97, %c1_98] : memref<9x2xf32, #tpu.memory_space<smem>>
    %c8_99 = arith.constant 8 : index
    %c1_100 = arith.constant 1 : index
    %68 = memref.load %arg6[%c8_99, %c1_100] : memref<9x2xf32, #tpu.memory_space<smem>>
    %c0_101 = arith.constant 0 : index
    %69 = memref.load %arg7[%c0_101] : memref<2xf32, #tpu.memory_space<smem>>
    %c1_102 = arith.constant 1 : index
    %70 = memref.load %arg7[%c1_102] : memref<2xf32, #tpu.memory_space<smem>>
    %c0_103 = arith.constant 0 : index
    %71 = memref.load %arg8[%c0_103] : memref<2xf32, #tpu.memory_space<smem>>
    %c1_104 = arith.constant 1 : index
    %72 = memref.load %arg8[%c1_104] : memref<2xf32, #tpu.memory_space<smem>>
    %c0_105 = arith.constant 0 : index
    %73 = memref.load %arg9[%c0_105] : memref<2xf32, #tpu.memory_space<smem>>
    %c1_106 = arith.constant 1 : index
    %74 = memref.load %arg9[%c1_106] : memref<2xf32, #tpu.memory_space<smem>>
    %75 = vector.broadcast %42 : f32 to vector<51x128xf32>
    %76 = vector.extract_strided_slice %0 {offsets = [0, 0], sizes = [51, 128], strides = [1, 1]} : vector<60x128xf32> to vector<51x128xf32>
    %77 = vector.broadcast %12 : f32 to vector<51x128xf32>
    %78 = arith.mulf %76, %77 : vector<51x128xf32>
    %79 = arith.addf %75, %78 : vector<51x128xf32>
    %80 = vector.extract_strided_slice %0 {offsets = [1, 0], sizes = [51, 128], strides = [1, 1]} : vector<60x128xf32> to vector<51x128xf32>
    %81 = vector.broadcast %13 : f32 to vector<51x128xf32>
    %82 = arith.mulf %80, %81 : vector<51x128xf32>
    %83 = arith.addf %79, %82 : vector<51x128xf32>
    %84 = vector.extract_strided_slice %0 {offsets = [2, 0], sizes = [51, 128], strides = [1, 1]} : vector<60x128xf32> to vector<51x128xf32>
    %85 = vector.broadcast %14 : f32 to vector<51x128xf32>
    %86 = arith.mulf %84, %85 : vector<51x128xf32>
    %87 = arith.addf %83, %86 : vector<51x128xf32>
    %88 = vector.extract_strided_slice %0 {offsets = [3, 0], sizes = [51, 128], strides = [1, 1]} : vector<60x128xf32> to vector<51x128xf32>
    %89 = vector.broadcast %15 : f32 to vector<51x128xf32>
    %90 = arith.mulf %88, %89 : vector<51x128xf32>
    %91 = arith.addf %87, %90 : vector<51x128xf32>
    %92 = vector.extract_strided_slice %0 {offsets = [4, 0], sizes = [51, 128], strides = [1, 1]} : vector<60x128xf32> to vector<51x128xf32>
    %93 = vector.broadcast %16 : f32 to vector<51x128xf32>
    %94 = arith.mulf %92, %93 : vector<51x128xf32>
    %95 = arith.addf %91, %94 : vector<51x128xf32>
    %96 = vector.extract_strided_slice %0 {offsets = [5, 0], sizes = [51, 128], strides = [1, 1]} : vector<60x128xf32> to vector<51x128xf32>
    %97 = vector.broadcast %17 : f32 to vector<51x128xf32>
    %98 = arith.mulf %96, %97 : vector<51x128xf32>
    %99 = arith.addf %95, %98 : vector<51x128xf32>
    %100 = vector.extract_strided_slice %0 {offsets = [6, 0], sizes = [51, 128], strides = [1, 1]} : vector<60x128xf32> to vector<51x128xf32>
    %101 = vector.broadcast %18 : f32 to vector<51x128xf32>
    %102 = arith.mulf %100, %101 : vector<51x128xf32>
    %103 = arith.addf %99, %102 : vector<51x128xf32>
    %104 = vector.extract_strided_slice %0 {offsets = [7, 0], sizes = [51, 128], strides = [1, 1]} : vector<60x128xf32> to vector<51x128xf32>
    %105 = vector.broadcast %19 : f32 to vector<51x128xf32>
    %106 = arith.mulf %104, %105 : vector<51x128xf32>
    %107 = arith.addf %103, %106 : vector<51x128xf32>
    %108 = vector.extract_strided_slice %0 {offsets = [8, 0], sizes = [51, 128], strides = [1, 1]} : vector<60x128xf32> to vector<51x128xf32>
    %109 = vector.broadcast %20 : f32 to vector<51x128xf32>
    %110 = arith.mulf %108, %109 : vector<51x128xf32>
    %111 = arith.addf %107, %110 : vector<51x128xf32>
    %112 = vector.extract_strided_slice %0 {offsets = [9, 0], sizes = [51, 128], strides = [1, 1]} : vector<60x128xf32> to vector<51x128xf32>
    %113 = vector.broadcast %21 : f32 to vector<51x128xf32>
    %114 = arith.mulf %112, %113 : vector<51x128xf32>
    %115 = arith.addf %111, %114 : vector<51x128xf32>
    %116 = vector.broadcast %6 : vector<1x128xf32> to vector<51x128xf32>
    %117 = arith.mulf %115, %116 : vector<51x128xf32>
    %118 = vector.shape_cast %117 : vector<51x128xf32> to vector<1x51x128xf32>
    %cst_107 = arith.constant dense<0.000000e+00> : vector<1xf32>
    %119 = vector.multi_reduction <add>, %118, %cst_107 [1, 2] : vector<1x51x128xf32> to vector<1xf32>
    %120 = vector.shape_cast %119 : vector<1xf32> to vector<1x1x1xf32>
    %121 = vector.extract %120[0, 0, 0] : f32 from vector<1x1x1xf32>
    %122 = arith.mulf %117, %117 : vector<51x128xf32>
    %123 = vector.shape_cast %122 : vector<51x128xf32> to vector<1x51x128xf32>
    %cst_108 = arith.constant dense<0.000000e+00> : vector<1xf32>
    %124 = vector.multi_reduction <add>, %123, %cst_108 [1, 2] : vector<1x51x128xf32> to vector<1xf32>
    %125 = vector.shape_cast %124 : vector<1xf32> to vector<1x1x1xf32>
    %126 = vector.extract %125[0, 0, 0] : f32 from vector<1x1x1xf32>
    %127 = arith.mulf %121, %9 : f32
    %128 = arith.mulf %126, %9 : f32
    %129 = arith.mulf %127, %127 : f32
    %130 = arith.subf %128, %129 : f32
    %131 = vector.broadcast %127 : f32 to vector<51x128xf32>
    %132 = arith.subf %115, %131 : vector<51x128xf32>
    %cst_109 = arith.constant 9.99999974E-6 : f32
    %133 = arith.addf %130, %cst_109 : f32
    %134 = math.rsqrt %133 : f32
    %135 = arith.mulf %134, %45 : f32
    %136 = vector.broadcast %135 : f32 to vector<51x128xf32>
    %137 = arith.mulf %132, %136 : vector<51x128xf32>
    %138 = vector.broadcast %48 : f32 to vector<51x128xf32>
    %139 = arith.addf %137, %138 : vector<51x128xf32>
    %140 = math.tanh %139 : vector<51x128xf32>
    %c0_110 = arith.constant 0 : index
    %c0_111 = arith.constant 0 : index
    %c0_112 = arith.constant 0 : index
    %141 = vector.load %arg14[%c0_110, %c0_111, %c0_112] : memref<3x51x128xf32, #tpu.memory_space<vmem>>, vector<1x51x128xf32>
    %142 = vector.shape_cast %141 : vector<1x51x128xf32> to vector<51x128xf32>
    %143 = vector.shape_cast %140 : vector<51x128xf32> to vector<1x51x128xf32>
    tpu.vector_store %arg14[%c0_110, %c0_111, %c0_112], %143 {strides = array<i32>} : memref<3x51x128xf32, #tpu.memory_space<vmem>>, vector<1x51x128xf32>,
    %144 = vector.broadcast %43 : f32 to vector<51x128xf32>
    %145 = vector.extract_strided_slice %0 {offsets = [0, 0], sizes = [51, 128], strides = [1, 1]} : vector<60x128xf32> to vector<51x128xf32>
    %146 = vector.broadcast %22 : f32 to vector<51x128xf32>
    %147 = arith.mulf %145, %146 : vector<51x128xf32>
    %148 = arith.addf %144, %147 : vector<51x128xf32>
    %149 = vector.extract_strided_slice %0 {offsets = [1, 0], sizes = [51, 128], strides = [1, 1]} : vector<60x128xf32> to vector<51x128xf32>
    %150 = vector.broadcast %23 : f32 to vector<51x128xf32>
    %151 = arith.mulf %149, %150 : vector<51x128xf32>
    %152 = arith.addf %148, %151 : vector<51x128xf32>
    %153 = vector.extract_strided_slice %0 {offsets = [2, 0], sizes = [51, 128], strides = [1, 1]} : vector<60x128xf32> to vector<51x128xf32>
    %154 = vector.broadcast %24 : f32 to vector<51x128xf32>
    %155 = arith.mulf %153, %154 : vector<51x128xf32>
    %156 = arith.addf %152, %155 : vector<51x128xf32>
    %157 = vector.extract_strided_slice %0 {offsets = [3, 0], sizes = [51, 128], strides = [1, 1]} : vector<60x128xf32> to vector<51x128xf32>
    %158 = vector.broadcast %25 : f32 to vector<51x128xf32>
    %159 = arith.mulf %157, %158 : vector<51x128xf32>
    %160 = arith.addf %156, %159 : vector<51x128xf32>
    %161 = vector.extract_strided_slice %0 {offsets = [4, 0], sizes = [51, 128], strides = [1, 1]} : vector<60x128xf32> to vector<51x128xf32>
    %162 = vector.broadcast %26 : f32 to vector<51x128xf32>
    %163 = arith.mulf %161, %162 : vector<51x128xf32>
    %164 = arith.addf %160, %163 : vector<51x128xf32>
    %165 = vector.extract_strided_slice %0 {offsets = [5, 0], sizes = [51, 128], strides = [1, 1]} : vector<60x128xf32> to vector<51x128xf32>
    %166 = vector.broadcast %27 : f32 to vector<51x128xf32>
    %167 = arith.mulf %165, %166 : vector<51x128xf32>
    %168 = arith.addf %164, %167 : vector<51x128xf32>
    %169 = vector.extract_strided_slice %0 {offsets = [6, 0], sizes = [51, 128], strides = [1, 1]} : vector<60x128xf32> to vector<51x128xf32>
    %170 = vector.broadcast %28 : f32 to vector<51x128xf32>
    %171 = arith.mulf %169, %170 : vector<51x128xf32>
    %172 = arith.addf %168, %171 : vector<51x128xf32>
    %173 = vector.extract_strided_slice %0 {offsets = [7, 0], sizes = [51, 128], strides = [1, 1]} : vector<60x128xf32> to vector<51x128xf32>
    %174 = vector.broadcast %29 : f32 to vector<51x128xf32>
    %175 = arith.mulf %173, %174 : vector<51x128xf32>
    %176 = arith.addf %172, %175 : vector<51x128xf32>
    %177 = vector.extract_strided_slice %0 {offsets = [8, 0], sizes = [51, 128], strides = [1, 1]} : vector<60x128xf32> to vector<51x128xf32>
    %178 = vector.broadcast %30 : f32 to vector<51x128xf32>
    %179 = arith.mulf %177, %178 : vector<51x128xf32>
    %180 = arith.addf %176, %179 : vector<51x128xf32>
    %181 = vector.extract_strided_slice %0 {offsets = [9, 0], sizes = [51, 128], strides = [1, 1]} : vector<60x128xf32> to vector<51x128xf32>
    %182 = vector.broadcast %31 : f32 to vector<51x128xf32>
    %183 = arith.mulf %181, %182 : vector<51x128xf32>
    %184 = arith.addf %180, %183 : vector<51x128xf32>
    %185 = vector.broadcast %6 : vector<1x128xf32> to vector<51x128xf32>
    %186 = arith.mulf %184, %185 : vector<51x128xf32>
    %187 = vector.shape_cast %186 : vector<51x128xf32> to vector<1x51x128xf32>
    %cst_113 = arith.constant dense<0.000000e+00> : vector<1xf32>
    %188 = vector.multi_reduction <add>, %187, %cst_113 [1, 2] : vector<1x51x128xf32> to vector<1xf32>
    %189 = vector.shape_cast %188 : vector<1xf32> to vector<1x1x1xf32>
    %190 = vector.extract %189[0, 0, 0] : f32 from vector<1x1x1xf32>
    %191 = arith.mulf %186, %186 : vector<51x128xf32>
    %192 = vector.shape_cast %191 : vector<51x128xf32> to vector<1x51x128xf32>
    %cst_114 = arith.constant dense<0.000000e+00> : vector<1xf32>
    %193 = vector.multi_reduction <add>, %192, %cst_114 [1, 2] : vector<1x51x128xf32> to vector<1xf32>
    %194 = vector.shape_cast %193 : vector<1xf32> to vector<1x1x1xf32>
    %195 = vector.extract %194[0, 0, 0] : f32 from vector<1x1x1xf32>
    %196 = arith.mulf %190, %9 : f32
    %197 = arith.mulf %195, %9 : f32
    %198 = arith.mulf %196, %196 : f32
    %199 = arith.subf %197, %198 : f32
    %200 = vector.broadcast %196 : f32 to vector<51x128xf32>
    %201 = arith.subf %184, %200 : vector<51x128xf32>
    %cst_115 = arith.constant 9.99999974E-6 : f32
    %202 = arith.addf %199, %cst_115 : f32
    %203 = math.rsqrt %202 : f32
    %204 = arith.mulf %203, %46 : f32
    %205 = vector.broadcast %204 : f32 to vector<51x128xf32>
    %206 = arith.mulf %201, %205 : vector<51x128xf32>
    %207 = vector.broadcast %49 : f32 to vector<51x128xf32>
    %208 = arith.addf %206, %207 : vector<51x128xf32>
    %209 = math.tanh %208 : vector<51x128xf32>
    %c1_116 = arith.constant 1 : index
    %c0_117 = arith.constant 0 : index
    %c0_118 = arith.constant 0 : index
    %210 = vector.load %arg14[%c1_116, %c0_117, %c0_118] : memref<3x51x128xf32, #tpu.memory_space<vmem>>, vector<1x51x128xf32>
    %211 = vector.shape_cast %210 : vector<1x51x128xf32> to vector<51x128xf32>
    %212 = vector.shape_cast %209 : vector<51x128xf32> to vector<1x51x128xf32>
    tpu.vector_store %arg14[%c1_116, %c0_117, %c0_118], %212 {strides = array<i32>} : memref<3x51x128xf32, #tpu.memory_space<vmem>>, vector<1x51x128xf32>,
    %213 = vector.broadcast %44 : f32 to vector<51x128xf32>
    %214 = vector.extract_strided_slice %0 {offsets = [0, 0], sizes = [51, 128], strides = [1, 1]} : vector<60x128xf32> to vector<51x128xf32>
    %215 = vector.broadcast %32 : f32 to vector<51x128xf32>
    %216 = arith.mulf %214, %215 : vector<51x128xf32>
    %217 = arith.addf %213, %216 : vector<51x128xf32>
    %218 = vector.extract_strided_slice %0 {offsets = [1, 0], sizes = [51, 128], strides = [1, 1]} : vector<60x128xf32> to vector<51x128xf32>
    %219 = vector.broadcast %33 : f32 to vector<51x128xf32>
    %220 = arith.mulf %218, %219 : vector<51x128xf32>
    %221 = arith.addf %217, %220 : vector<51x128xf32>
    %222 = vector.extract_strided_slice %0 {offsets = [2, 0], sizes = [51, 128], strides = [1, 1]} : vector<60x128xf32> to vector<51x128xf32>
    %223 = vector.broadcast %34 : f32 to vector<51x128xf32>
    %224 = arith.mulf %222, %223 : vector<51x128xf32>
    %225 = arith.addf %221, %224 : vector<51x128xf32>
    %226 = vector.extract_strided_slice %0 {offsets = [3, 0], sizes = [51, 128], strides = [1, 1]} : vector<60x128xf32> to vector<51x128xf32>
    %227 = vector.broadcast %35 : f32 to vector<51x128xf32>
    %228 = arith.mulf %226, %227 : vector<51x128xf32>
    %229 = arith.addf %225, %228 : vector<51x128xf32>
    %230 = vector.extract_strided_slice %0 {offsets = [4, 0], sizes = [51, 128], strides = [1, 1]} : vector<60x128xf32> to vector<51x128xf32>
    %231 = vector.broadcast %36 : f32 to vector<51x128xf32>
    %232 = arith.mulf %230, %231 : vector<51x128xf32>
    %233 = arith.addf %229, %232 : vector<51x128xf32>
    %234 = vector.extract_strided_slice %0 {offsets = [5, 0], sizes = [51, 128], strides = [1, 1]} : vector<60x128xf32> to vector<51x128xf32>
    %235 = vector.broadcast %37 : f32 to vector<51x128xf32>
    %236 = arith.mulf %234, %235 : vector<51x128xf32>
    %237 = arith.addf %233, %236 : vector<51x128xf32>
    %238 = vector.extract_strided_slice %0 {offsets = [6, 0], sizes = [51, 128], strides = [1, 1]} : vector<60x128xf32> to vector<51x128xf32>
    %239 = vector.broadcast %38 : f32 to vector<51x128xf32>
    %240 = arith.mulf %238, %239 : vector<51x128xf32>
    %241 = arith.addf %237, %240 : vector<51x128xf32>
    %242 = vector.extract_strided_slice %0 {offsets = [7, 0], sizes = [51, 128], strides = [1, 1]} : vector<60x128xf32> to vector<51x128xf32>
    %243 = vector.broadcast %39 : f32 to vector<51x128xf32>
    %244 = arith.mulf %242, %243 : vector<51x128xf32>
    %245 = arith.addf %241, %244 : vector<51x128xf32>
    %246 = vector.extract_strided_slice %0 {offsets = [8, 0], sizes = [51, 128], strides = [1, 1]} : vector<60x128xf32> to vector<51x128xf32>
    %247 = vector.broadcast %40 : f32 to vector<51x128xf32>
    %248 = arith.mulf %246, %247 : vector<51x128xf32>
    %249 = arith.addf %245, %248 : vector<51x128xf32>
    %250 = vector.extract_strided_slice %0 {offsets = [9, 0], sizes = [51, 128], strides = [1, 1]} : vector<60x128xf32> to vector<51x128xf32>
    %251 = vector.broadcast %41 : f32 to vector<51x128xf32>
    %252 = arith.mulf %250, %251 : vector<51x128xf32>
    %253 = arith.addf %249, %252 : vector<51x128xf32>
    %254 = vector.broadcast %6 : vector<1x128xf32> to vector<51x128xf32>
    %255 = arith.mulf %253, %254 : vector<51x128xf32>
    %256 = vector.shape_cast %255 : vector<51x128xf32> to vector<1x51x128xf32>
    %cst_119 = arith.constant dense<0.000000e+00> : vector<1xf32>
    %257 = vector.multi_reduction <add>, %256, %cst_119 [1, 2] : vector<1x51x128xf32> to vector<1xf32>
    %258 = vector.shape_cast %257 : vector<1xf32> to vector<1x1x1xf32>
    %259 = vector.extract %258[0, 0, 0] : f32 from vector<1x1x1xf32>
    %260 = arith.mulf %255, %255 : vector<51x128xf32>
    %261 = vector.shape_cast %260 : vector<51x128xf32> to vector<1x51x128xf32>
    %cst_120 = arith.constant dense<0.000000e+00> : vector<1xf32>
    %262 = vector.multi_reduction <add>, %261, %cst_120 [1, 2] : vector<1x51x128xf32> to vector<1xf32>
    %263 = vector.shape_cast %262 : vector<1xf32> to vector<1x1x1xf32>
    %264 = vector.extract %263[0, 0, 0] : f32 from vector<1x1x1xf32>
    %265 = arith.mulf %259, %9 : f32
    %266 = arith.mulf %264, %9 : f32
    %267 = arith.mulf %265, %265 : f32
    %268 = arith.subf %266, %267 : f32
    %269 = vector.broadcast %265 : f32 to vector<51x128xf32>
    %270 = arith.subf %253, %269 : vector<51x128xf32>
    %cst_121 = arith.constant 9.99999974E-6 : f32
    %271 = arith.addf %268, %cst_121 : f32
    %272 = math.rsqrt %271 : f32
    %273 = arith.mulf %272, %47 : f32
    %274 = vector.broadcast %273 : f32 to vector<51x128xf32>
    %275 = arith.mulf %270, %274 : vector<51x128xf32>
    %276 = vector.broadcast %50 : f32 to vector<51x128xf32>
    %277 = arith.addf %275, %276 : vector<51x128xf32>
    %278 = math.tanh %277 : vector<51x128xf32>
    %c2_122 = arith.constant 2 : index
    %c0_123 = arith.constant 0 : index
    %c0_124 = arith.constant 0 : index
    %279 = vector.load %arg14[%c2_122, %c0_123, %c0_124] : memref<3x51x128xf32, #tpu.memory_space<vmem>>, vector<1x51x128xf32>
    %280 = vector.shape_cast %279 : vector<1x51x128xf32> to vector<51x128xf32>
    %281 = vector.shape_cast %278 : vector<51x128xf32> to vector<1x51x128xf32>
    tpu.vector_store %arg14[%c2_122, %c0_123, %c0_124], %281 {strides = array<i32>} : memref<3x51x128xf32, #tpu.memory_space<vmem>>, vector<1x51x128xf32>,
    %282 = vector.broadcast %69 : f32 to vector<49x128xf32>
    %283 = vector.extract_strided_slice %140 {offsets = [0, 0], sizes = [49, 128], strides = [1, 1]} : vector<51x128xf32> to vector<49x128xf32>
    %284 = vector.broadcast %51 : f32 to vector<49x128xf32>
    %285 = arith.mulf %283, %284 : vector<49x128xf32>
    %286 = arith.addf %282, %285 : vector<49x128xf32>
    %287 = vector.extract_strided_slice %140 {offsets = [1, 0], sizes = [49, 128], strides = [1, 1]} : vector<51x128xf32> to vector<49x128xf32>
    %288 = vector.broadcast %52 : f32 to vector<49x128xf32>
    %289 = arith.mulf %287, %288 : vector<49x128xf32>
    %290 = arith.addf %286, %289 : vector<49x128xf32>
    %291 = vector.extract_strided_slice %140 {offsets = [2, 0], sizes = [49, 128], strides = [1, 1]} : vector<51x128xf32> to vector<49x128xf32>
    %292 = vector.broadcast %53 : f32 to vector<49x128xf32>
    %293 = arith.mulf %291, %292 : vector<49x128xf32>
    %294 = arith.addf %290, %293 : vector<49x128xf32>
    %295 = vector.extract_strided_slice %209 {offsets = [0, 0], sizes = [49, 128], strides = [1, 1]} : vector<51x128xf32> to vector<49x128xf32>
    %296 = vector.broadcast %54 : f32 to vector<49x128xf32>
    %297 = arith.mulf %295, %296 : vector<49x128xf32>
    %298 = arith.addf %294, %297 : vector<49x128xf32>
    %299 = vector.extract_strided_slice %209 {offsets = [1, 0], sizes = [49, 128], strides = [1, 1]} : vector<51x128xf32> to vector<49x128xf32>
    %300 = vector.broadcast %55 : f32 to vector<49x128xf32>
    %301 = arith.mulf %299, %300 : vector<49x128xf32>
    %302 = arith.addf %298, %301 : vector<49x128xf32>
    %303 = vector.extract_strided_slice %209 {offsets = [2, 0], sizes = [49, 128], strides = [1, 1]} : vector<51x128xf32> to vector<49x128xf32>
    %304 = vector.broadcast %56 : f32 to vector<49x128xf32>
    %305 = arith.mulf %303, %304 : vector<49x128xf32>
    %306 = arith.addf %302, %305 : vector<49x128xf32>
    %307 = vector.extract_strided_slice %278 {offsets = [0, 0], sizes = [49, 128], strides = [1, 1]} : vector<51x128xf32> to vector<49x128xf32>
    %308 = vector.broadcast %57 : f32 to vector<49x128xf32>
    %309 = arith.mulf %307, %308 : vector<49x128xf32>
    %310 = arith.addf %306, %309 : vector<49x128xf32>
    %311 = vector.extract_strided_slice %278 {offsets = [1, 0], sizes = [49, 128], strides = [1, 1]} : vector<51x128xf32> to vector<49x128xf32>
    %312 = vector.broadcast %58 : f32 to vector<49x128xf32>
    %313 = arith.mulf %311, %312 : vector<49x128xf32>
    %314 = arith.addf %310, %313 : vector<49x128xf32>
    %315 = vector.extract_strided_slice %278 {offsets = [2, 0], sizes = [49, 128], strides = [1, 1]} : vector<51x128xf32> to vector<49x128xf32>
    %316 = vector.broadcast %59 : f32 to vector<49x128xf32>
    %317 = arith.mulf %315, %316 : vector<49x128xf32>
    %318 = arith.addf %314, %317 : vector<49x128xf32>
    %319 = vector.broadcast %6 : vector<1x128xf32> to vector<49x128xf32>
    %320 = arith.mulf %318, %319 : vector<49x128xf32>
    %321 = vector.shape_cast %320 : vector<49x128xf32> to vector<1x49x128xf32>
    %cst_125 = arith.constant dense<0.000000e+00> : vector<1xf32>
    %322 = vector.multi_reduction <add>, %321, %cst_125 [1, 2] : vector<1x49x128xf32> to vector<1xf32>
    %323 = vector.shape_cast %322 : vector<1xf32> to vector<1x1x1xf32>
    %324 = vector.extract %323[0, 0, 0] : f32 from vector<1x1x1xf32>
    %325 = arith.mulf %320, %320 : vector<49x128xf32>
    %326 = vector.shape_cast %325 : vector<49x128xf32> to vector<1x49x128xf32>
    %cst_126 = arith.constant dense<0.000000e+00> : vector<1xf32>
    %327 = vector.multi_reduction <add>, %326, %cst_126 [1, 2] : vector<1x49x128xf32> to vector<1xf32>
    %328 = vector.shape_cast %327 : vector<1xf32> to vector<1x1x1xf32>
    %329 = vector.extract %328[0, 0, 0] : f32 from vector<1x1x1xf32>
    %330 = arith.mulf %324, %11 : f32
    %331 = arith.mulf %329, %11 : f32
    %332 = arith.mulf %330, %330 : f32
    %333 = arith.subf %331, %332 : f32
    %334 = vector.broadcast %330 : f32 to vector<49x128xf32>
    %335 = arith.subf %318, %334 : vector<49x128xf32>
    %cst_127 = arith.constant 9.99999974E-6 : f32
    %336 = arith.addf %333, %cst_127 : f32
    %337 = math.rsqrt %336 : f32
    %338 = arith.mulf %337, %71 : f32
    %339 = vector.broadcast %338 : f32 to vector<49x128xf32>
    %340 = arith.mulf %335, %339 : vector<49x128xf32>
    %341 = vector.broadcast %73 : f32 to vector<49x128xf32>
    %342 = arith.addf %340, %341 : vector<49x128xf32>
    %343 = math.tanh %342 : vector<49x128xf32>
    %c0_128 = arith.constant 0 : index
    %c0_129 = arith.constant 0 : index
    %c0_130 = arith.constant 0 : index
    %344 = vector.load %arg13[%c0_128, %c0_129, %c0_130] : memref<2x49x128xf32, #tpu.memory_space<vmem>>, vector<1x49x128xf32>
    %345 = vector.shape_cast %344 : vector<1x49x128xf32> to vector<49x128xf32>
    %346 = vector.shape_cast %343 : vector<49x128xf32> to vector<1x49x128xf32>
    tpu.vector_store %arg13[%c0_128, %c0_129, %c0_130], %346 {strides = array<i32>} : memref<2x49x128xf32, #tpu.memory_space<vmem>>, vector<1x49x128xf32>,
    %347 = vector.broadcast %70 : f32 to vector<49x128xf32>
    %348 = vector.extract_strided_slice %140 {offsets = [0, 0], sizes = [49, 128], strides = [1, 1]} : vector<51x128xf32> to vector<49x128xf32>
    %349 = vector.broadcast %60 : f32 to vector<49x128xf32>
    %350 = arith.mulf %348, %349 : vector<49x128xf32>
    %351 = arith.addf %347, %350 : vector<49x128xf32>
    %352 = vector.extract_strided_slice %140 {offsets = [1, 0], sizes = [49, 128], strides = [1, 1]} : vector<51x128xf32> to vector<49x128xf32>
    %353 = vector.broadcast %61 : f32 to vector<49x128xf32>
    %354 = arith.mulf %352, %353 : vector<49x128xf32>
    %355 = arith.addf %351, %354 : vector<49x128xf32>
    %356 = vector.extract_strided_slice %140 {offsets = [2, 0], sizes = [49, 128], strides = [1, 1]} : vector<51x128xf32> to vector<49x128xf32>
    %357 = vector.broadcast %62 : f32 to vector<49x128xf32>
    %358 = arith.mulf %356, %357 : vector<49x128xf32>
    %359 = arith.addf %355, %358 : vector<49x128xf32>
    %360 = vector.extract_strided_slice %209 {offsets = [0, 0], sizes = [49, 128], strides = [1, 1]} : vector<51x128xf32> to vector<49x128xf32>
    %361 = vector.broadcast %63 : f32 to vector<49x128xf32>
    %362 = arith.mulf %360, %361 : vector<49x128xf32>
    %363 = arith.addf %359, %362 : vector<49x128xf32>
    %364 = vector.extract_strided_slice %209 {offsets = [1, 0], sizes = [49, 128], strides = [1, 1]} : vector<51x128xf32> to vector<49x128xf32>
    %365 = vector.broadcast %64 : f32 to vector<49x128xf32>
    %366 = arith.mulf %364, %365 : vector<49x128xf32>
    %367 = arith.addf %363, %366 : vector<49x128xf32>
    %368 = vector.extract_strided_slice %209 {offsets = [2, 0], sizes = [49, 128], strides = [1, 1]} : vector<51x128xf32> to vector<49x128xf32>
    %369 = vector.broadcast %65 : f32 to vector<49x128xf32>
    %370 = arith.mulf %368, %369 : vector<49x128xf32>
    %371 = arith.addf %367, %370 : vector<49x128xf32>
    %372 = vector.extract_strided_slice %278 {offsets = [0, 0], sizes = [49, 128], strides = [1, 1]} : vector<51x128xf32> to vector<49x128xf32>
    %373 = vector.broadcast %66 : f32 to vector<49x128xf32>
    %374 = arith.mulf %372, %373 : vector<49x128xf32>
    %375 = arith.addf %371, %374 : vector<49x128xf32>
    %376 = vector.extract_strided_slice %278 {offsets = [1, 0], sizes = [49, 128], strides = [1, 1]} : vector<51x128xf32> to vector<49x128xf32>
    %377 = vector.broadcast %67 : f32 to vector<49x128xf32>
    %378 = arith.mulf %376, %377 : vector<49x128xf32>
    %379 = arith.addf %375, %378 : vector<49x128xf32>
    %380 = vector.extract_strided_slice %278 {offsets = [2, 0], sizes = [49, 128], strides = [1, 1]} : vector<51x128xf32> to vector<49x128xf32>
    %381 = vector.broadcast %68 : f32 to vector<49x128xf32>
    %382 = arith.mulf %380, %381 : vector<49x128xf32>
    %383 = arith.addf %379, %382 : vector<49x128xf32>
    %384 = vector.broadcast %6 : vector<1x128xf32> to vector<49x128xf32>
    %385 = arith.mulf %383, %384 : vector<49x128xf32>
    %386 = vector.shape_cast %385 : vector<49x128xf32> to vector<1x49x128xf32>
    %cst_131 = arith.constant dense<0.000000e+00> : vector<1xf32>
    %387 = vector.multi_reduction <add>, %386, %cst_131 [1, 2] : vector<1x49x128xf32> to vector<1xf32>
    %388 = vector.shape_cast %387 : vector<1xf32> to vector<1x1x1xf32>
    %389 = vector.extract %388[0, 0, 0] : f32 from vector<1x1x1xf32>
    %390 = arith.mulf %385, %385 : vector<49x128xf32>
    %391 = vector.shape_cast %390 : vector<49x128xf32> to vector<1x49x128xf32>
    %cst_132 = arith.constant dense<0.000000e+00> : vector<1xf32>
    %392 = vector.multi_reduction <add>, %391, %cst_132 [1, 2] : vector<1x49x128xf32> to vector<1xf32>
    %393 = vector.shape_cast %392 : vector<1xf32> to vector<1x1x1xf32>
    %394 = vector.extract %393[0, 0, 0] : f32 from vector<1x1x1xf32>
    %395 = arith.mulf %389, %11 : f32
    %396 = arith.mulf %394, %11 : f32
    %397 = arith.mulf %395, %395 : f32
    %398 = arith.subf %396, %397 : f32
    %399 = vector.broadcast %395 : f32 to vector<49x128xf32>
    %400 = arith.subf %383, %399 : vector<49x128xf32>
    %cst_133 = arith.constant 9.99999974E-6 : f32
    %401 = arith.addf %398, %cst_133 : f32
    %402 = math.rsqrt %401 : f32
    %403 = arith.mulf %402, %72 : f32
    %404 = vector.broadcast %403 : f32 to vector<49x128xf32>
    %405 = arith.mulf %400, %404 : vector<49x128xf32>
    %406 = vector.broadcast %74 : f32 to vector<49x128xf32>
    %407 = arith.addf %405, %406 : vector<49x128xf32>
    %408 = math.tanh %407 : vector<49x128xf32>
    %c1_134 = arith.constant 1 : index
    %c0_135 = arith.constant 0 : index
    %c0_136 = arith.constant 0 : index
    %409 = vector.load %arg13[%c1_134, %c0_135, %c0_136] : memref<2x49x128xf32, #tpu.memory_space<vmem>>, vector<1x49x128xf32>
    %410 = vector.shape_cast %409 : vector<1x49x128xf32> to vector<49x128xf32>
    %411 = vector.shape_cast %408 : vector<49x128xf32> to vector<1x49x128xf32>
    tpu.vector_store %arg13[%c1_134, %c0_135, %c0_136], %411 {strides = array<i32>} : memref<2x49x128xf32, #tpu.memory_space<vmem>>, vector<1x49x128xf32>,
    %c0_137 = arith.constant 0 : index
    %c0_138 = arith.constant 0 : index
    %412 = vector.load %arg11[%c0_137, %c0_138] : memref<10x1xf32, #tpu.memory_space<vmem>>, vector<10x1xf32>
    %413 = vector.shape_cast %412 : vector<10x1xf32> to vector<10x1xf32>
    %414 = vector.broadcast %413 : vector<10x1xf32> to vector<10x128xf32>
    %c0_139 = arith.constant 0 : index
    %c0_140 = arith.constant 0 : index
    %c0_141 = arith.constant 0 : index
    %415 = vector.load %arg10[%c0_139, %c0_140, %c0_141] : memref<2x10x49xf32, #tpu.memory_space<vmem>>, vector<1x10x49xf32>
    %416 = vector.shape_cast %415 : vector<1x10x49xf32> to vector<10x49xf32>
    %cst_142 = arith.constant dense<0.000000e+00> : vector<10x128xf32>
    %417 = tpu.matmul %416, %343, %cst_142 {dimension_numbers = #tpu.dot_dimension_numbers<[1], [0], [0], [1], [0, 0, 1, 1], [], []>} : vector<10x49xf32>, vector<49x128xf32>, vector<10x128xf32> -> vector<10x128xf32>
    %418 = arith.addf %414, %417 : vector<10x128xf32>
    %c1_143 = arith.constant 1 : index
    %c0_144 = arith.constant 0 : index
    %c0_145 = arith.constant 0 : index
    %419 = vector.load %arg10[%c1_143, %c0_144, %c0_145] : memref<2x10x49xf32, #tpu.memory_space<vmem>>, vector<1x10x49xf32>
    %420 = vector.shape_cast %419 : vector<1x10x49xf32> to vector<10x49xf32>
    %cst_146 = arith.constant dense<0.000000e+00> : vector<10x128xf32>
    %421 = tpu.matmul %420, %408, %cst_146 {dimension_numbers = #tpu.dot_dimension_numbers<[1], [0], [0], [1], [0, 0, 1, 1], [], []>} : vector<10x49xf32>, vector<49x128xf32>, vector<10x128xf32> -> vector<10x128xf32>
    %422 = arith.addf %418, %421 : vector<10x128xf32>
    %c0_147 = arith.constant 0 : index
    %c0_148 = arith.constant 0 : index
    %423 = vector.load %arg12[%c0_147, %c0_148] : memref<10x128xf32, #tpu.memory_space<vmem>>, vector<10x128xf32>
    tpu.vector_store %arg12[%c0_147, %c0_148], %422 {strides = array<i32>} : memref<10x128xf32, #tpu.memory_space<vmem>>, vector<10x128xf32>,
    return
  }
}

</mosaic_0001>

<llo_original>
// kernel: tpu_custom_call.1
$region0: #{tpu_custom_call.1}
  #allocation0 [shape = 'u32[]', space=smem, size = 0x4, offset = 0x4, fixed_abs, tag = 'smem constant byte address 0x4 - core index']
  #allocation1 [shape = 'u32[144,128]{1,0:T(1,128)}', space=vmem, size = 0x12000, scoped, tag = 'internal scratch']
  #allocation2 [shape = 's32[1]{0:T(128)S(6)}', space=smem, size = 0x200, scoped, tag = 'scoped memory for tpu_custom_call.1']
  %s0 = inlined_call_operand.<no memory space> [shape: s32[1], index: 0, kind: input, shape index: {}]
  %s1 = inlined_call_operand.vmem [shape: f32[60,128], index: 1, kind: input, shape index: {}]
  %s2 = inlined_call_operand.vmem [shape: f32[10,3], index: 2, kind: input, shape index: {}]
  %s3 = inlined_call_operand.vmem [shape: f32[3], index: 3, kind: input, shape index: {}]
  %s4 = inlined_call_operand.vmem [shape: f32[3], index: 4, kind: input, shape index: {}]
  %s5 = inlined_call_operand.vmem [shape: f32[3], index: 5, kind: input, shape index: {}]
  %s6 = inlined_call_operand.vmem [shape: f32[9,2], index: 6, kind: input, shape index: {}]
  %s7 = inlined_call_operand.vmem [shape: f32[2], index: 7, kind: input, shape index: {}]
  %s8 = inlined_call_operand.vmem [shape: f32[2], index: 8, kind: input, shape index: {}]
  %s9 = inlined_call_operand.vmem [shape: f32[2], index: 9, kind: input, shape index: {}]
  %s10 = inlined_call_operand.vmem [shape: f32[2,10,49], index: 10, kind: input, shape index: {}]
  %s11 = inlined_call_operand.vmem [shape: f32[10,1], index: 11, kind: input, shape index: {}]
  %s12 = inlined_call_operand.hbm [shape: f32[10,128], index: 12, kind: output, shape index: {0}]
  %s13 = inlined_call_operand.vmem [shape: f32[2,49,128], index: 13, kind: output, shape index: {1}]
  %s14 = inlined_call_operand.hbm [shape: f32[3,51,128], index: 14, kind: output, shape index: {2}]
  %15 = xla_tuple %s12, %s13, %s14
  %s16 = sld [smem:[#allocation0]]
  $region106: #{tpu_custom_call.1} parent=0
    _
  %s18 = ssub.s32 1, %s16
  %s19 = scalar_select 0, %s18, %s16
  %20 = sst [smem:[#allocation2]] %s0
  $region1: #{tpu_custom_call.1} parent=0
    #allocation3 [shape = 'u8[8192]{0}', space=smem, size = 0x2000, scoped, tag = 'input window, operand 2, single buffered']
    #allocation4 [shape = 's32[1]{0}', space=sflag, size = 0x4, scoped, tag = 'scoped memory for tpu_custom_call.1']
    #allocation5 [shape = 's32[1]{0}', space=sflag, size = 0x4, scoped, tag = 'scoped memory for tpu_custom_call.1']
    #allocation6 [shape = 'u8[512]{0}', space=smem, size = 0x200, scoped, tag = 'input window, operand 3, single buffered']
    #allocation7 [shape = 's32[1]{0}', space=sflag, size = 0x4, scoped, tag = 'scoped memory for tpu_custom_call.1']
    #allocation8 [shape = 'u8[512]{0}', space=smem, size = 0x200, scoped, tag = 'input window, operand 4, single buffered']
    #allocation9 [shape = 'u8[512]{0}', space=smem, size = 0x200, scoped, tag = 'input window, operand 5, single buffered']
    #allocation10 [shape = 's32[1]{0}', space=sflag, size = 0x4, scoped, tag = 'scoped memory for tpu_custom_call.1']
    #allocation11 [shape = 'u8[8192]{0}', space=smem, size = 0x2000, scoped, tag = 'input window, operand 6, single buffered']
    #allocation12 [shape = 'u8[512]{0}', space=smem, size = 0x200, scoped, tag = 'input window, operand 7, single buffered']
    #allocation13 [shape = 's32[1]{0}', space=sflag, size = 0x4, scoped, tag = 'scoped memory for tpu_custom_call.1']
    #allocation14 [shape = 'u8[512]{0}', space=smem, size = 0x200, scoped, tag = 'input window, operand 8, single buffered']
    #allocation15 [shape = 'u8[512]{0}', space=smem, size = 0x200, scoped, tag = 'input window, operand 9, single buffered']
    #allocation16 [shape = 's32[1]{0}', space=sflag, size = 0x4, scoped, tag = 'scoped memory for tpu_custom_call.1']
    #allocation17 [shape = 'u8[8192]{0}', space=vmem, size = 0x2000, scoped, tag = 'output window, operand 0, single buffered']
    #allocation18 [shape = 'u8[86016]{0}', space=vmem, size = 0x15000, scoped, tag = 'output window, operand 2, single buffered']
    #allocation19 [shape = 's32[1]{0}', space=sflag, size = 0x4, scoped, tag = 'scoped memory for tpu_custom_call.1']
    %21 = vsyncpa [#allocation5], 0
    %22 = vsyncpa [#allocation7], 0
    %23 = vsyncpa [#allocation10], 0
    %24 = vsyncpa [#allocation13], 0
    %25 = vsyncpa [#allocation16], 0
    %26 = vsyncpa [#allocation4], 0
    %27 = vsyncpa [#allocation19], 0
    // Predicated region
    $region2: #{tpu_custom_call.1} parent=1 // pred_check
      _
    $region3: #{tpu_custom_call.1} parent=1 // pred_check_branch
      %29 = sbr.rel (0) target = $region5
    $region4: #{tpu_custom_call.1} parent=1 // pred_region
      _
    $region5: #{tpu_custom_call.1} parent=1 // pred_fallthru
      _
    // Predicated region
    $region6: #{tpu_custom_call.1} parent=1 // pred_check
      _
    $region7: #{tpu_custom_call.1} parent=1 // pred_check_branch
      %31 = sbr.rel (0) target = $region9
    $region8: #{tpu_custom_call.1} parent=1 // pred_region
      _
    $region9: #{tpu_custom_call.1} parent=1 // pred_fallthru
      _
    // Predicated region
    $region10: #{tpu_custom_call.1} parent=1 // pred_check
      _
    $region11: #{tpu_custom_call.1} parent=1 // pred_check_branch
      %33 = sbr.rel (0) target = $region13
    $region12: #{tpu_custom_call.1} parent=1 // pred_region
      %s35 = ssub.s32 256, 256
      %36 = vsyncadd [#allocation5], %s35
      %s37 = sshll.u32 %s2, 4
      %s38 = int_to_ptr.vmem [resolvable:$true] %s37
      %43 = dma.vmem_to_smem %s38, 256, [#allocation3], [#allocation5], 128, 128, 8
    $region13: #{tpu_custom_call.1} parent=1 // pred_fallthru
      _
    // Predicated region
    $region14: #{tpu_custom_call.1} parent=1 // pred_check
      _
    $region15: #{tpu_custom_call.1} parent=1 // pred_check_branch
      %45 = sbr.rel (0) target = $region17
    $region16: #{tpu_custom_call.1} parent=1 // pred_region
      %s47 = ssub.s32 16, 16
      %48 = vsyncadd [#allocation7], %s47
      %s50 = sshll.u32 %s3, 4
      %s51 = int_to_ptr.vmem [resolvable:$true] %s50
      %53 = dma.vmem_to_smem %s51, 16, [#allocation6], [#allocation7]
    $region17: #{tpu_custom_call.1} parent=1 // pred_fallthru
      _
    // Predicated region
    $region18: #{tpu_custom_call.1} parent=1 // pred_check
      _
    $region19: #{tpu_custom_call.1} parent=1 // pred_check_branch
      %55 = sbr.rel (0) target = $region21
    $region20: #{tpu_custom_call.1} parent=1 // pred_region
      %s57 = ssub.s32 16, 16
      %58 = vsyncadd [#allocation7], %s57
      %s60 = sshll.u32 %s4, 4
      %s61 = int_to_ptr.vmem [resolvable:$true] %s60
      %63 = dma.vmem_to_smem %s61, 16, [#allocation8], [#allocation7]
    $region21: #{tpu_custom_call.1} parent=1 // pred_fallthru
      _
    // Predicated region
    $region22: #{tpu_custom_call.1} parent=1 // pred_check
      _
    $region23: #{tpu_custom_call.1} parent=1 // pred_check_branch
      %65 = sbr.rel (0) target = $region25
    $region24: #{tpu_custom_call.1} parent=1 // pred_region
      %s67 = ssub.s32 16, 16
      %68 = vsyncadd [#allocation10], %s67
      %s70 = sshll.u32 %s5, 4
      %s71 = int_to_ptr.vmem [resolvable:$true] %s70
      %73 = dma.vmem_to_smem %s71, 16, [#allocation9], [#allocation10]
    $region25: #{tpu_custom_call.1} parent=1 // pred_fallthru
      _
    // Predicated region
    $region26: #{tpu_custom_call.1} parent=1 // pred_check
      _
    $region27: #{tpu_custom_call.1} parent=1 // pred_check_branch
      %75 = sbr.rel (0) target = $region29
    $region28: #{tpu_custom_call.1} parent=1 // pred_region
      %s77 = ssub.s32 256, 256
      %78 = vsyncadd [#allocation10], %s77
      %s79 = sshll.u32 %s6, 4
      %s80 = int_to_ptr.vmem [resolvable:$true] %s79
      %85 = dma.vmem_to_smem %s80, 256, [#allocation11], [#allocation10], 128, 128, 8
    $region29: #{tpu_custom_call.1} parent=1 // pred_fallthru
      _
    // Predicated region
    $region30: #{tpu_custom_call.1} parent=1 // pred_check
      _
    $region31: #{tpu_custom_call.1} parent=1 // pred_check_branch
      %87 = sbr.rel (0) target = $region33
    $region32: #{tpu_custom_call.1} parent=1 // pred_region
      %s89 = ssub.s32 16, 16
      %90 = vsyncadd [#allocation13], %s89
      %s92 = sshll.u32 %s7, 4
      %s93 = int_to_ptr.vmem [resolvable:$true] %s92
      %95 = dma.vmem_to_smem %s93, 16, [#allocation12], [#allocation13]
    $region33: #{tpu_custom_call.1} parent=1 // pred_fallthru
      _
    // Predicated region
    $region34: #{tpu_custom_call.1} parent=1 // pred_check
      _
    $region35: #{tpu_custom_call.1} parent=1 // pred_check_branch
      %97 = sbr.rel (0) target = $region37
    $region36: #{tpu_custom_call.1} parent=1 // pred_region
      %s99 = ssub.s32 16, 16
      %100 = vsyncadd [#allocation13], %s99
      %s102 = sshll.u32 %s8, 4
      %s103 = int_to_ptr.vmem [resolvable:$true] %s102
      %105 = dma.vmem_to_smem %s103, 16, [#allocation14], [#allocation13]
    $region37: #{tpu_custom_call.1} parent=1 // pred_fallthru
      _
    // Predicated region
    $region38: #{tpu_custom_call.1} parent=1 // pred_check
      _
    $region39: #{tpu_custom_call.1} parent=1 // pred_check_branch
      %107 = sbr.rel (0) target = $region41
    $region40: #{tpu_custom_call.1} parent=1 // pred_region
      %s109 = ssub.s32 16, 16
      %110 = vsyncadd [#allocation16], %s109
      %s112 = sshll.u32 %s9, 4
      %s113 = int_to_ptr.vmem [resolvable:$true] %s112
      %115 = dma.vmem_to_smem %s113, 16, [#allocation15], [#allocation16]
    $region41: #{tpu_custom_call.1} parent=1 // pred_fallthru
      _
    // Predicated region
    $region42: #{tpu_custom_call.1} parent=1 // pred_check
      _
    $region43: #{tpu_custom_call.1} parent=1 // pred_check_branch
      %117 = sbr.rel (0) target = $region45
    $region44: #{tpu_custom_call.1} parent=1 // pred_region
      _
    $region45: #{tpu_custom_call.1} parent=1 // pred_fallthru
      _
    // Predicated region
    $region46: #{tpu_custom_call.1} parent=1 // pred_check
      _
    $region47: #{tpu_custom_call.1} parent=1 // pred_check_branch
      %119 = sbr.rel (0) target = $region49
    $region48: #{tpu_custom_call.1} parent=1 // pred_region
      _
    $region49: #{tpu_custom_call.1} parent=1 // pred_fallthru
      _
    // Predicated region
    $region50: #{tpu_custom_call.1} parent=1 // pred_check
      _
    $region51: #{tpu_custom_call.1} parent=1 // pred_check_branch
      %121 = sbr.rel (0) target = $region53
    $region52: #{tpu_custom_call.1} parent=1 // pred_region
      %122 = dma.done [#allocation5], 256
    $region53: #{tpu_custom_call.1} parent=1 // pred_fallthru
      _
    // Predicated region
    $region54: #{tpu_custom_call.1} parent=1 // pred_check
      _
    $region55: #{tpu_custom_call.1} parent=1 // pred_check_branch
      %124 = sbr.rel (0) target = $region57
    $region56: #{tpu_custom_call.1} parent=1 // pred_region
      %125 = dma.done [#allocation7], 16
    $region57: #{tpu_custom_call.1} parent=1 // pred_fallthru
      _
    // Predicated region
    $region58: #{tpu_custom_call.1} parent=1 // pred_check
      _
    $region59: #{tpu_custom_call.1} parent=1 // pred_check_branch
      %127 = sbr.rel (0) target = $region61
    $region60: #{tpu_custom_call.1} parent=1 // pred_region
      %128 = dma.done [#allocation7], 16
    $region61: #{tpu_custom_call.1} parent=1 // pred_fallthru
      _
    // Predicated region
    $region62: #{tpu_custom_call.1} parent=1 // pred_check
      _
    $region63: #{tpu_custom_call.1} parent=1 // pred_check_branch
      %130 = sbr.rel (0) target = $region65
    $region64: #{tpu_custom_call.1} parent=1 // pred_region
      %131 = dma.done [#allocation10], 16
    $region65: #{tpu_custom_call.1} parent=1 // pred_fallthru
      _
    // Predicated region
    $region66: #{tpu_custom_call.1} parent=1 // pred_check
      _
    $region67: #{tpu_custom_call.1} parent=1 // pred_check_branch
      %133 = sbr.rel (0) target = $region69
    $region68: #{tpu_custom_call.1} parent=1 // pred_region
      %134 = dma.done [#allocation10], 256
    $region69: #{tpu_custom_call.1} parent=1 // pred_fallthru
      _
    // Predicated region
    $region70: #{tpu_custom_call.1} parent=1 // pred_check
      _
    $region71: #{tpu_custom_call.1} parent=1 // pred_check_branch
      %136 = sbr.rel (0) target = $region73
    $region72: #{tpu_custom_call.1} parent=1 // pred_region
      %137 = dma.done [#allocation13], 16
    $region73: #{tpu_custom_call.1} parent=1 // pred_fallthru
      _
    // Predicated region
    $region74: #{tpu_custom_call.1} parent=1 // pred_check
      _
    $region75: #{tpu_custom_call.1} parent=1 // pred_check_branch
      %139 = sbr.rel (0) target = $region77
    $region76: #{tpu_custom_call.1} parent=1 // pred_region
      %140 = dma.done [#allocation13], 16
    $region77: #{tpu_custom_call.1} parent=1 // pred_fallthru
      _
    // Predicated region
    $region78: #{tpu_custom_call.1} parent=1 // pred_check
      _
    $region79: #{tpu_custom_call.1} parent=1 // pred_check_branch
      %142 = sbr.rel (0) target = $region81
    $region80: #{tpu_custom_call.1} parent=1 // pred_region
      %143 = dma.done [#allocation16], 16
    $region81: #{tpu_custom_call.1} parent=1 // pred_fallthru
      _
    %144 = sfence
    %v145 = vld [vmem:[%s1] sm:$0xff]
    %v146 = vld [vmem:[%s1 + $0x8] sm:$0xff]
    %v147 = vld [vmem:[%s1 + $0x10] sm:$0xff]
    %v148 = vld [vmem:[%s1 + $0x18] sm:$0xff]
    %v149 = vld [vmem:[%s1 + $0x20] sm:$0xff]
    %v150 = vld [vmem:[%s1 + $0x28] sm:$0xff]
    %v151 = vld [vmem:[%s1 + $0x30] sm:$0xff]
    %v152 = vld [vmem:[%s1 + $0x38] sm:$0xf]
    %s153 = sld [smem:[#allocation2]]
    %v154 = vlaneseq
    %v155 = vand.u32 %v154, 127
    %v156 = vstv %s153
    %vm157 = vcmp.lt.s32.totalorder %v155, %v156
    %v158 = vsel %vm157, 1, 0
    %v159 = vcvt.s32.f32 %v158
    %s160 = scvt.s32.f32 %s153
    %s161 = smul.f32 %s160, 51.0
    %v162 = vstv %s161
    %v163 = vrcp.pop %v162
    %s164 = vtos %v163
    %s165 = smul.f32 %s160, 49.0
    %v166 = vstv %s165
    %v167 = vrcp.pop %v166
    %s168 = vtos %v167
    %s169 = sld [smem:[#allocation3]]
    %s170 = sld [smem:[#allocation3 + $0x80]]
    %s171 = sld [smem:[#allocation3 + $0x100]]
    %s172 = sld [smem:[#allocation3 + $0x180]]
    %s173 = sld [smem:[#allocation3 + $0x200]]
    %s174 = sld [smem:[#allocation3 + $0x280]]
    %s175 = sld [smem:[#allocation3 + $0x300]]
    %s176 = sld [smem:[#allocation3 + $0x380]]
    %s177 = sld [smem:[#allocation3 + $0x400]]
    %s178 = sld [smem:[#allocation3 + $0x480]]
    %s179 = sld [smem:[#allocation3 + $0x1]]
    %s180 = sld [smem:[#allocation3 + $0x81]]
    %s181 = sld [smem:[#allocation3 + $0x101]]
    %s182 = sld [smem:[#allocation3 + $0x181]]
    %s183 = sld [smem:[#allocation3 + $0x201]]
    %s184 = sld [smem:[#allocation3 + $0x281]]
    %s185 = sld [smem:[#allocation3 + $0x301]]
    %s186 = sld [smem:[#allocation3 + $0x381]]
    %s187 = sld [smem:[#allocation3 + $0x401]]
    %s188 = sld [smem:[#allocation3 + $0x481]]
    %s189 = sld [smem:[#allocation3 + $0x2]]
    %s190 = sld [smem:[#allocation3 + $0x82]]
    %s191 = sld [smem:[#allocation3 + $0x102]]
    %s192 = sld [smem:[#allocation3 + $0x182]]
    %s193 = sld [smem:[#allocation3 + $0x202]]
    %s194 = sld [smem:[#allocation3 + $0x282]]
    %s195 = sld [smem:[#allocation3 + $0x302]]
    %s196 = sld [smem:[#allocation3 + $0x382]]
    %s197 = sld [smem:[#allocation3 + $0x402]]
    %s198 = sld [smem:[#allocation3 + $0x482]]
    %s199 = sld [smem:[#allocation6]]
    %s200 = sld [smem:[#allocation6 + $0x1]]
    %s201 = sld [smem:[#allocation6 + $0x2]]
    %s202 = sld [smem:[#allocation8]]
    %s203 = sld [smem:[#allocation8 + $0x1]]
    %s204 = sld [smem:[#allocation8 + $0x2]]
    %s205 = sld [smem:[#allocation9]]
    %s206 = sld [smem:[#allocation9 + $0x1]]
    %s207 = sld [smem:[#allocation9 + $0x2]]
    %s208 = sld [smem:[#allocation11]]
    %s209 = sld [smem:[#allocation11 + $0x180]]
    %s210 = sld [smem:[#allocation11 + $0x300]]
    %s211 = sld [smem:[#allocation11 + $0x80]]
    %s212 = sld [smem:[#allocation11 + $0x200]]
    %s213 = sld [smem:[#allocation11 + $0x380]]
    %s214 = sld [smem:[#allocation11 + $0x100]]
    %s215 = sld [smem:[#allocation11 + $0x280]]
    %s216 = sld [smem:[#allocation11 + $0x400]]
    %s217 = sld [smem:[#allocation11 + $0x1]]
    %s218 = sld [smem:[#allocation11 + $0x181]]
    %s219 = sld [smem:[#allocation11 + $0x301]]
    %s220 = sld [smem:[#allocation11 + $0x81]]
    %s221 = sld [smem:[#allocation11 + $0x201]]
    %s222 = sld [smem:[#allocation11 + $0x381]]
    %s223 = sld [smem:[#allocation11 + $0x101]]
    %s224 = sld [smem:[#allocation11 + $0x281]]
    %s225 = sld [smem:[#allocation11 + $0x401]]
    %s226 = sld [smem:[#allocation12]]
    %s227 = sld [smem:[#allocation12 + $0x1]]
    %s228 = sld [smem:[#allocation14]]
    %s229 = sld [smem:[#allocation14 + $0x1]]
    %s230 = sld [smem:[#allocation15]]
    %s231 = sld [smem:[#allocation15 + $0x1]]
    %v232 = vstv %s199
    %v233 = vstv %s169
    %v234 = vmul.f32 %v145, %v233
    %v235 = vmul.f32 %v146, %v233
    %v236 = vmul.f32 %v147, %v233
    %v237 = vmul.f32 %v148, %v233
    %v238 = vmul.f32 %v149, %v233
    %v239 = vmul.f32 %v150, %v233
    %v240 = vmul.f32 %v151, %v233
    %v241 = vadd.f32 %v232, %v234
    %v242 = vadd.f32 %v232, %v235
    %v243 = vadd.f32 %v232, %v236
    %v244 = vadd.f32 %v232, %v237
    %v245 = vadd.f32 %v232, %v238
    %v246 = vadd.f32 %v232, %v239
    %v247 = vadd.f32 %v232, %v240
    %v248 = vstv %s170
    %v249 = vmul.f32 %v145, %v248
    %v250 = vmul.f32 %v146, %v248
    %v251 = vmul.f32 %v147, %v248
    %v252 = vmul.f32 %v148, %v248
    %v253 = vmul.f32 %v149, %v248
    %v254 = vmul.f32 %v150, %v248
    %v255 = vmul.f32 %v151, %v248
    %vm263 = vcmask 1046528
    %v264 = vrot.slane %v249, 1
    %v265 = vrot.slane %v250, 1
    %v266 = vsel %vm263, %v264, %v265
    %v267 = vrot.slane %v251, 1
    %v268 = vsel %vm263, %v265, %v267
    %v269 = vrot.slane %v252, 1
    %v270 = vsel %vm263, %v267, %v269
    %v271 = vrot.slane %v253, 1
    %v272 = vsel %vm263, %v269, %v271
    %v273 = vrot.slane %v254, 1
    %v274 = vsel %vm263, %v271, %v273
    %v275 = vrot.slane %v255, 1
    %v276 = vsel %vm263, %v273, %v275
    %v284 = vadd.f32 %v241, %v266
    %v285 = vadd.f32 %v242, %v268
    %v286 = vadd.f32 %v243, %v270
    %v287 = vadd.f32 %v244, %v272
    %v288 = vadd.f32 %v245, %v274
    %v289 = vadd.f32 %v246, %v276
    %v290 = vadd.f32 %v247, %v275
    %v291 = vstv %s171
    %v292 = vmul.f32 %v145, %v291
    %v293 = vmul.f32 %v146, %v291
    %v294 = vmul.f32 %v147, %v291
    %v295 = vmul.f32 %v148, %v291
    %v296 = vmul.f32 %v149, %v291
    %v297 = vmul.f32 %v150, %v291
    %v298 = vmul.f32 %v151, %v291
    %vm306 = vcmask 1045504
    %v307 = vrot.slane %v292, 2
    %v308 = vrot.slane %v293, 2
    %v309 = vsel %vm306, %v307, %v308
    %v310 = vrot.slane %v294, 2
    %v311 = vsel %vm306, %v308, %v310
    %v312 = vrot.slane %v295, 2
    %v313 = vsel %vm306, %v310, %v312
    %v314 = vrot.slane %v296, 2
    %v315 = vsel %vm306, %v312, %v314
    %v316 = vrot.slane %v297, 2
    %v317 = vsel %vm306, %v314, %v316
    %v318 = vrot.slane %v298, 2
    %v319 = vsel %vm306, %v316, %v318
    %v327 = vadd.f32 %v284, %v309
    %v328 = vadd.f32 %v285, %v311
    %v329 = vadd.f32 %v286, %v313
    %v330 = vadd.f32 %v287, %v315
    %v331 = vadd.f32 %v288, %v317
    %v332 = vadd.f32 %v289, %v319
    %v333 = vadd.f32 %v290, %v318
    %v334 = vstv %s172
    %v335 = vmul.f32 %v145, %v334
    %v336 = vmul.f32 %v146, %v334
    %v337 = vmul.f32 %v147, %v334
    %v338 = vmul.f32 %v148, %v334
    %v339 = vmul.f32 %v149, %v334
    %v340 = vmul.f32 %v150, %v334
    %v341 = vmul.f32 %v151, %v334
    %vm349 = vcmask 1044480
    %v350 = vrot.slane %v335, 3
    %v351 = vrot.slane %v336, 3
    %v352 = vsel %vm349, %v350, %v351
    %v353 = vrot.slane %v337, 3
    %v354 = vsel %vm349, %v351, %v353
    %v355 = vrot.slane %v338, 3
    %v356 = vsel %vm349, %v353, %v355
    %v357 = vrot.slane %v339, 3
    %v358 = vsel %vm349, %v355, %v357
    %v359 = vrot.slane %v340, 3
    %v360 = vsel %vm349, %v357, %v359
    %v361 = vrot.slane %v341, 3
    %v362 = vsel %vm349, %v359, %v361
    %v370 = vadd.f32 %v327, %v352
    %v371 = vadd.f32 %v328, %v354
    %v372 = vadd.f32 %v329, %v356
    %v373 = vadd.f32 %v330, %v358
    %v374 = vadd.f32 %v331, %v360
    %v375 = vadd.f32 %v332, %v362
    %v376 = vadd.f32 %v333, %v361
    %v377 = vstv %s173
    %v378 = vmul.f32 %v145, %v377
    %v379 = vmul.f32 %v146, %v377
    %v380 = vmul.f32 %v147, %v377
    %v381 = vmul.f32 %v148, %v377
    %v382 = vmul.f32 %v149, %v377
    %v383 = vmul.f32 %v150, %v377
    %v384 = vmul.f32 %v151, %v377
    %vm392 = vcmask 1043456
    %v393 = vrot.slane %v378, 4
    %v394 = vrot.slane %v379, 4
    %v395 = vsel %vm392, %v393, %v394
    %v396 = vrot.slane %v380, 4
    %v397 = vsel %vm392, %v394, %v396
    %v398 = vrot.slane %v381, 4
    %v399 = vsel %vm392, %v396, %v398
    %v400 = vrot.slane %v382, 4
    %v401 = vsel %vm392, %v398, %v400
    %v402 = vrot.slane %v383, 4
    %v403 = vsel %vm392, %v400, %v402
    %v404 = vrot.slane %v384, 4
    %v405 = vsel %vm392, %v402, %v404
    %v413 = vadd.f32 %v370, %v395
    %v414 = vadd.f32 %v371, %v397
    %v415 = vadd.f32 %v372, %v399
    %v416 = vadd.f32 %v373, %v401
    %v417 = vadd.f32 %v374, %v403
    %v418 = vadd.f32 %v375, %v405
    %v419 = vadd.f32 %v376, %v404
    %v420 = vstv %s174
    %v421 = vmul.f32 %v145, %v420
    %v422 = vmul.f32 %v146, %v420
    %v423 = vmul.f32 %v147, %v420
    %v424 = vmul.f32 %v148, %v420
    %v425 = vmul.f32 %v149, %v420
    %v426 = vmul.f32 %v150, %v420
    %v427 = vmul.f32 %v151, %v420
    %vm435 = vcmask 1042432
    %v436 = vrot.slane %v421, 5
    %v437 = vrot.slane %v422, 5
    %v438 = vsel %vm435, %v436, %v437
    %v439 = vrot.slane %v423, 5
    %v440 = vsel %vm435, %v437, %v439
    %v441 = vrot.slane %v424, 5
    %v442 = vsel %vm435, %v439, %v441
    %v443 = vrot.slane %v425, 5
    %v444 = vsel %vm435, %v441, %v443
    %v445 = vrot.slane %v426, 5
    %v446 = vsel %vm435, %v443, %v445
    %v447 = vrot.slane %v427, 5
    %v448 = vsel %vm435, %v445, %v447
    %v456 = vadd.f32 %v413, %v438
    %v457 = vadd.f32 %v414, %v440
    %v458 = vadd.f32 %v415, %v442
    %v459 = vadd.f32 %v416, %v444
    %v460 = vadd.f32 %v417, %v446
    %v461 = vadd.f32 %v418, %v448
    %v462 = vadd.f32 %v419, %v447
    %v463 = vstv %s175
    %v464 = vmul.f32 %v145, %v463
    %v465 = vmul.f32 %v146, %v463
    %v466 = vmul.f32 %v147, %v463
    %v467 = vmul.f32 %v148, %v463
    %v468 = vmul.f32 %v149, %v463
    %v469 = vmul.f32 %v150, %v463
    %v470 = vmul.f32 %v151, %v463
    %v471 = vmul.f32 %v152, %v463
    %vm480 = vcmask 1041408
    %v481 = vrot.slane %v464, 6
    %v482 = vrot.slane %v465, 6
    %v483 = vsel %vm480, %v481, %v482
    %v484 = vrot.slane %v466, 6
    %v485 = vsel %vm480, %v482, %v484
    %v486 = vrot.slane %v467, 6
    %v487 = vsel %vm480, %v484, %v486
    %v488 = vrot.slane %v468, 6
    %v489 = vsel %vm480, %v486, %v488
    %v490 = vrot.slane %v469, 6
    %v491 = vsel %vm480, %v488, %v490
    %v492 = vrot.slane %v470, 6
    %v493 = vsel %vm480, %v490, %v492
    %v494 = vrot.slane %v471, 6
    %v495 = vsel %vm480, %v492, %v494
    %v503 = vadd.f32 %v456, %v483
    %v504 = vadd.f32 %v457, %v485
    %v505 = vadd.f32 %v458, %v487
    %v506 = vadd.f32 %v459, %v489
    %v507 = vadd.f32 %v460, %v491
    %v508 = vadd.f32 %v461, %v493
    %v509 = vadd.f32 %v462, %v495
    %v510 = vstv %s176
    %v511 = vmul.f32 %v145, %v510
    %v512 = vmul.f32 %v146, %v510
    %v513 = vmul.f32 %v147, %v510
    %v514 = vmul.f32 %v148, %v510
    %v515 = vmul.f32 %v149, %v510
    %v516 = vmul.f32 %v150, %v510
    %v517 = vmul.f32 %v151, %v510
    %v518 = vmul.f32 %v152, %v510
    %vm527 = vcmask 1040384
    %v528 = vrot.slane %v511, 7
    %v529 = vrot.slane %v512, 7
    %v530 = vsel %vm527, %v528, %v529
    %v531 = vrot.slane %v513, 7
    %v532 = vsel %vm527, %v529, %v531
    %v533 = vrot.slane %v514, 7
    %v534 = vsel %vm527, %v531, %v533
    %v535 = vrot.slane %v515, 7
    %v536 = vsel %vm527, %v533, %v535
    %v537 = vrot.slane %v516, 7
    %v538 = vsel %vm527, %v535, %v537
    %v539 = vrot.slane %v517, 7
    %v540 = vsel %vm527, %v537, %v539
    %v541 = vrot.slane %v518, 7
    %v542 = vsel %vm527, %v539, %v541
    %v550 = vadd.f32 %v503, %v530
    %v551 = vadd.f32 %v504, %v532
    %v552 = vadd.f32 %v505, %v534
    %v553 = vadd.f32 %v506, %v536
    %v554 = vadd.f32 %v507, %v538
    %v555 = vadd.f32 %v508, %v540
    %v556 = vadd.f32 %v509, %v542
    %v557 = vstv %s177
    %v558 = vmul.f32 %v146, %v557
    %v559 = vmul.f32 %v147, %v557
    %v560 = vmul.f32 %v148, %v557
    %v561 = vmul.f32 %v149, %v557
    %v562 = vmul.f32 %v150, %v557
    %v563 = vmul.f32 %v151, %v557
    %v564 = vmul.f32 %v152, %v557
    %v565 = vadd.f32 %v550, %v558
    %v566 = vadd.f32 %v551, %v559
    %v567 = vadd.f32 %v552, %v560
    %v568 = vadd.f32 %v553, %v561
    %v569 = vadd.f32 %v554, %v562
    %v570 = vadd.f32 %v555, %v563
    %v571 = vadd.f32 %v556, %v564
    %v572 = vstv %s178
    %v573 = vmul.f32 %v146, %v572
    %v574 = vmul.f32 %v147, %v572
    %v575 = vmul.f32 %v148, %v572
    %v576 = vmul.f32 %v149, %v572
    %v577 = vmul.f32 %v150, %v572
    %v578 = vmul.f32 %v151, %v572
    %v579 = vmul.f32 %v152, %v572
    %v587 = vrot.slane %v573, 1
    %v588 = vrot.slane %v574, 1
    %v589 = vsel %vm263, %v587, %v588
    %v590 = vrot.slane %v575, 1
    %v591 = vsel %vm263, %v588, %v590
    %v592 = vrot.slane %v576, 1
    %v593 = vsel %vm263, %v590, %v592
    %v594 = vrot.slane %v577, 1
    %v595 = vsel %vm263, %v592, %v594
    %v596 = vrot.slane %v578, 1
    %v597 = vsel %vm263, %v594, %v596
    %v598 = vrot.slane %v579, 1
    %v599 = vsel %vm263, %v596, %v598
    %v607 = vadd.f32 %v565, %v589
    %v608 = vadd.f32 %v566, %v591
    %v609 = vadd.f32 %v567, %v593
    %v610 = vadd.f32 %v568, %v595
    %v611 = vadd.f32 %v569, %v597
    %v612 = vadd.f32 %v570, %v599
    %v613 = vadd.f32 %v571, %v598
    %v614 = vmul.f32 %v607, %v159
    %v615 = vmul.f32 %v608, %v159
    %v616 = vmul.f32 %v609, %v159
    %v617 = vmul.f32 %v610, %v159
    %v618 = vmul.f32 %v611, %v159
    %v619 = vmul.f32 %v612, %v159
    %v620 = vmul.f32 %v613, %v159
    %v621 = vadd.f32 %v614, %v615
    %v622 = vadd.f32 %v621, %v616
    %v623 = vadd.f32 %v622, %v617
    %v624 = vadd.f32 %v623, %v618
    %v625 = vadd.f32 %v624, %v619
    %v626 = vsel %vm435, %v620, 0.0
    %v627 = vadd.f32 %v625, %v626
    %628 = vadd.xlane.f32.xlu0 %v627
    %v629 = vpop.xlane.xlu0 %628
    %v630 = vrot.slane %v629, 4
    %v631 = vadd.f32 %v629, %v630
    %v632 = vrot.slane %v631, 2
    %v633 = vadd.f32 %v631, %v632
    %v634 = vrot.slane %v633, 1
    %v635 = vadd.f32 %v633, %v634
    %s636 = vtos %v635
    %v637 = vmul.f32 %v614, %v614
    %v638 = vmul.f32 %v615, %v615
    %v639 = vmul.f32 %v616, %v616
    %v640 = vmul.f32 %v617, %v617
    %v641 = vmul.f32 %v618, %v618
    %v642 = vmul.f32 %v619, %v619
    %v643 = vmul.f32 %v620, %v620
    %v644 = vadd.f32 %v637, %v638
    %v645 = vadd.f32 %v644, %v639
    %v646 = vadd.f32 %v645, %v640
    %v647 = vadd.f32 %v646, %v641
    %v648 = vadd.f32 %v647, %v642
    %v649 = vsel %vm435, %v643, 0.0
    %v650 = vadd.f32 %v648, %v649
    %651 = vadd.xlane.f32.xlu0 %v650
    %v652 = vpop.xlane.xlu0 %651
    %v653 = vrot.slane %v652, 4
    %v654 = vadd.f32 %v652, %v653
    %v655 = vrot.slane %v654, 2
    %v656 = vadd.f32 %v654, %v655
    %v657 = vrot.slane %v656, 1
    %v658 = vadd.f32 %v656, %v657
    %s659 = vtos %v658
    %s660 = smul.f32 %s636, %s164
    %s661 = smul.f32 %s659, %s164
    %s662 = smul.f32 %s660, %s660
    %s663 = ssub.f32 %s661, %s662
    %v664 = vstv %s660
    %v665 = vsub.f32 %v607, %v664
    %v666 = vsub.f32 %v608, %v664
    %v667 = vsub.f32 %v609, %v664
    %v668 = vsub.f32 %v610, %v664
    %v669 = vsub.f32 %v611, %v664
    %v670 = vsub.f32 %v612, %v664
    %v671 = vsub.f32 %v613, %v664
    %s672 = sadd.f32 %s663, 1e-05
    %v673 = vstv %s672
    %v674 = vrsqrt.pop %v673
    %s675 = vtos %v674
    %s676 = smul.f32 %s675, %s202
    %v677 = vstv %s676
    %v678 = vmul.f32 %v665, %v677
    %v679 = vmul.f32 %v666, %v677
    %v680 = vmul.f32 %v667, %v677
    %v681 = vmul.f32 %v668, %v677
    %v682 = vmul.f32 %v669, %v677
    %v683 = vmul.f32 %v670, %v677
    %v684 = vmul.f32 %v671, %v677
    %v685 = vstv %s205
    %v686 = vadd.f32 %v678, %v685
    %v687 = vadd.f32 %v679, %v685
    %v688 = vadd.f32 %v680, %v685
    %v689 = vadd.f32 %v681, %v685
    %v690 = vadd.f32 %v682, %v685
    %v691 = vadd.f32 %v683, %v685
    %v692 = vadd.f32 %v684, %v685
    %v693 = vtanh.pop %v686
    %v694 = vtanh.pop %v687
    %v695 = vtanh.pop %v688
    %v696 = vtanh.pop %v689
    %v697 = vtanh.pop %v690
    %v698 = vtanh.pop %v691
    %v699 = vtanh.pop %v692
    %700 = vst [vmem:[#allocation18] sm:$0xff] %v693
    %701 = vst [vmem:[#allocation18 + $0x8] sm:$0xff] %v694
    %702 = vst [vmem:[#allocation18 + $0x10] sm:$0xff] %v695
    %703 = vst [vmem:[#allocation18 + $0x18] sm:$0xff] %v696
    %704 = vst [vmem:[#allocation18 + $0x20] sm:$0xff] %v697
    %705 = vst [vmem:[#allocation18 + $0x28] sm:$0xff] %v698
    %706 = vst [vmem:[#allocation18 + $0x30] sm:$0x7] %v699
    %v707 = vstv %s200
    %v708 = vstv %s179
    %v709 = vmul.f32 %v145, %v708
    %v710 = vmul.f32 %v146, %v708
    %v711 = vmul.f32 %v147, %v708
    %v712 = vmul.f32 %v148, %v708
    %v713 = vmul.f32 %v149, %v708
    %v714 = vmul.f32 %v150, %v708
    %v715 = vmul.f32 %v151, %v708
    %v716 = vadd.f32 %v707, %v709
    %v717 = vadd.f32 %v707, %v710
    %v718 = vadd.f32 %v707, %v711
    %v719 = vadd.f32 %v707, %v712
    %v720 = vadd.f32 %v707, %v713
    %v721 = vadd.f32 %v707, %v714
    %v722 = vadd.f32 %v707, %v715
    %v723 = vstv %s180
    %v724 = vmul.f32 %v145, %v723
    %v725 = vmul.f32 %v146, %v723
    %v726 = vmul.f32 %v147, %v723
    %v727 = vmul.f32 %v148, %v723
    %v728 = vmul.f32 %v149, %v723
    %v729 = vmul.f32 %v150, %v723
    %v730 = vmul.f32 %v151, %v723
    %v738 = vrot.slane %v724, 1
    %v739 = vrot.slane %v725, 1
    %v740 = vsel %vm263, %v738, %v739
    %v741 = vrot.slane %v726, 1
    %v742 = vsel %vm263, %v739, %v741
    %v743 = vrot.slane %v727, 1
    %v744 = vsel %vm263, %v741, %v743
    %v745 = vrot.slane %v728, 1
    %v746 = vsel %vm263, %v743, %v745
    %v747 = vrot.slane %v729, 1
    %v748 = vsel %vm263, %v745, %v747
    %v749 = vrot.slane %v730, 1
    %v750 = vsel %vm263, %v747, %v749
    %v758 = vadd.f32 %v716, %v740
    %v759 = vadd.f32 %v717, %v742
    %v760 = vadd.f32 %v718, %v744
    %v761 = vadd.f32 %v719, %v746
    %v762 = vadd.f32 %v720, %v748
    %v763 = vadd.f32 %v721, %v750
    %v764 = vadd.f32 %v722, %v749
    %v765 = vstv %s181
    %v766 = vmul.f32 %v145, %v765
    %v767 = vmul.f32 %v146, %v765
    %v768 = vmul.f32 %v147, %v765
    %v769 = vmul.f32 %v148, %v765
    %v770 = vmul.f32 %v149, %v765
    %v771 = vmul.f32 %v150, %v765
    %v772 = vmul.f32 %v151, %v765
    %v780 = vrot.slane %v766, 2
    %v781 = vrot.slane %v767, 2
    %v782 = vsel %vm306, %v780, %v781
    %v783 = vrot.slane %v768, 2
    %v784 = vsel %vm306, %v781, %v783
    %v785 = vrot.slane %v769, 2
    %v786 = vsel %vm306, %v783, %v785
    %v787 = vrot.slane %v770, 2
    %v788 = vsel %vm306, %v785, %v787
    %v789 = vrot.slane %v771, 2
    %v790 = vsel %vm306, %v787, %v789
    %v791 = vrot.slane %v772, 2
    %v792 = vsel %vm306, %v789, %v791
    %v800 = vadd.f32 %v758, %v782
    %v801 = vadd.f32 %v759, %v784
    %v802 = vadd.f32 %v760, %v786
    %v803 = vadd.f32 %v761, %v788
    %v804 = vadd.f32 %v762, %v790
    %v805 = vadd.f32 %v763, %v792
    %v806 = vadd.f32 %v764, %v791
    %v807 = vstv %s182
    %v808 = vmul.f32 %v145, %v807
    %v809 = vmul.f32 %v146, %v807
    %v810 = vmul.f32 %v147, %v807
    %v811 = vmul.f32 %v148, %v807
    %v812 = vmul.f32 %v149, %v807
    %v813 = vmul.f32 %v150, %v807
    %v814 = vmul.f32 %v151, %v807
    %v822 = vrot.slane %v808, 3
    %v823 = vrot.slane %v809, 3
    %v824 = vsel %vm349, %v822, %v823
    %v825 = vrot.slane %v810, 3
    %v826 = vsel %vm349, %v823, %v825
    %v827 = vrot.slane %v811, 3
    %v828 = vsel %vm349, %v825, %v827
    %v829 = vrot.slane %v812, 3
    %v830 = vsel %vm349, %v827, %v829
    %v831 = vrot.slane %v813, 3
    %v832 = vsel %vm349, %v829, %v831
    %v833 = vrot.slane %v814, 3
    %v834 = vsel %vm349, %v831, %v833
    %v842 = vadd.f32 %v800, %v824
    %v843 = vadd.f32 %v801, %v826
    %v844 = vadd.f32 %v802, %v828
    %v845 = vadd.f32 %v803, %v830
    %v846 = vadd.f32 %v804, %v832
    %v847 = vadd.f32 %v805, %v834
    %v848 = vadd.f32 %v806, %v833
    %v849 = vstv %s183
    %v850 = vmul.f32 %v145, %v849
    %v851 = vmul.f32 %v146, %v849
    %v852 = vmul.f32 %v147, %v849
    %v853 = vmul.f32 %v148, %v849
    %v854 = vmul.f32 %v149, %v849
    %v855 = vmul.f32 %v150, %v849
    %v856 = vmul.f32 %v151, %v849
    %v864 = vrot.slane %v850, 4
    %v865 = vrot.slane %v851, 4
    %v866 = vsel %vm392, %v864, %v865
    %v867 = vrot.slane %v852, 4
    %v868 = vsel %vm392, %v865, %v867
    %v869 = vrot.slane %v853, 4
    %v870 = vsel %vm392, %v867, %v869
    %v871 = vrot.slane %v854, 4
    %v872 = vsel %vm392, %v869, %v871
    %v873 = vrot.slane %v855, 4
    %v874 = vsel %vm392, %v871, %v873
    %v875 = vrot.slane %v856, 4
    %v876 = vsel %vm392, %v873, %v875
    %v884 = vadd.f32 %v842, %v866
    %v885 = vadd.f32 %v843, %v868
    %v886 = vadd.f32 %v844, %v870
    %v887 = vadd.f32 %v845, %v872
    %v888 = vadd.f32 %v846, %v874
    %v889 = vadd.f32 %v847, %v876
    %v890 = vadd.f32 %v848, %v875
    %v891 = vstv %s184
    %v892 = vmul.f32 %v145, %v891
    %v893 = vmul.f32 %v146, %v891
    %v894 = vmul.f32 %v147, %v891
    %v895 = vmul.f32 %v148, %v891
    %v896 = vmul.f32 %v149, %v891
    %v897 = vmul.f32 %v150, %v891
    %v898 = vmul.f32 %v151, %v891
    %v906 = vrot.slane %v892, 5
    %v907 = vrot.slane %v893, 5
    %v908 = vsel %vm435, %v906, %v907
    %v909 = vrot.slane %v894, 5
    %v910 = vsel %vm435, %v907, %v909
    %v911 = vrot.slane %v895, 5
    %v912 = vsel %vm435, %v909, %v911
    %v913 = vrot.slane %v896, 5
    %v914 = vsel %vm435, %v911, %v913
    %v915 = vrot.slane %v897, 5
    %v916 = vsel %vm435, %v913, %v915
    %v917 = vrot.slane %v898, 5
    %v918 = vsel %vm435, %v915, %v917
    %v926 = vadd.f32 %v884, %v908
    %v927 = vadd.f32 %v885, %v910
    %v928 = vadd.f32 %v886, %v912
    %v929 = vadd.f32 %v887, %v914
    %v930 = vadd.f32 %v888, %v916
    %v931 = vadd.f32 %v889, %v918
    %v932 = vadd.f32 %v890, %v917
    %v933 = vstv %s185
    %v934 = vmul.f32 %v145, %v933
    %v935 = vmul.f32 %v146, %v933
    %v936 = vmul.f32 %v147, %v933
    %v937 = vmul.f32 %v148, %v933
    %v938 = vmul.f32 %v149, %v933
    %v939 = vmul.f32 %v150, %v933
    %v940 = vmul.f32 %v151, %v933
    %v941 = vmul.f32 %v152, %v933
    %v950 = vrot.slane %v934, 6
    %v951 = vrot.slane %v935, 6
    %v952 = vsel %vm480, %v950, %v951
    %v953 = vrot.slane %v936, 6
    %v954 = vsel %vm480, %v951, %v953
    %v955 = vrot.slane %v937, 6
    %v956 = vsel %vm480, %v953, %v955
    %v957 = vrot.slane %v938, 6
    %v958 = vsel %vm480, %v955, %v957
    %v959 = vrot.slane %v939, 6
    %v960 = vsel %vm480, %v957, %v959
    %v961 = vrot.slane %v940, 6
    %v962 = vsel %vm480, %v959, %v961
    %v963 = vrot.slane %v941, 6
    %v964 = vsel %vm480, %v961, %v963
    %v972 = vadd.f32 %v926, %v952
    %v973 = vadd.f32 %v927, %v954
    %v974 = vadd.f32 %v928, %v956
    %v975 = vadd.f32 %v929, %v958
    %v976 = vadd.f32 %v930, %v960
    %v977 = vadd.f32 %v931, %v962
    %v978 = vadd.f32 %v932, %v964
    %v979 = vstv %s186
    %v980 = vmul.f32 %v145, %v979
    %v981 = vmul.f32 %v146, %v979
    %v982 = vmul.f32 %v147, %v979
    %v983 = vmul.f32 %v148, %v979
    %v984 = vmul.f32 %v149, %v979
    %v985 = vmul.f32 %v150, %v979
    %v986 = vmul.f32 %v151, %v979
    %v987 = vmul.f32 %v152, %v979
    %v996 = vrot.slane %v980, 7
    %v997 = vrot.slane %v981, 7
    %v998 = vsel %vm527, %v996, %v997
    %v999 = vrot.slane %v982, 7
    %v1000 = vsel %vm527, %v997, %v999
    %v1001 = vrot.slane %v983, 7
    %v1002 = vsel %vm527, %v999, %v1001
    %v1003 = vrot.slane %v984, 7
    %v1004 = vsel %vm527, %v1001, %v1003
    %v1005 = vrot.slane %v985, 7
    %v1006 = vsel %vm527, %v1003, %v1005
    %v1007 = vrot.slane %v986, 7
    %v1008 = vsel %vm527, %v1005, %v1007
    %v1009 = vrot.slane %v987, 7
    %v1010 = vsel %vm527, %v1007, %v1009
    %v1018 = vadd.f32 %v972, %v998
    %v1019 = vadd.f32 %v973, %v1000
    %v1020 = vadd.f32 %v974, %v1002
    %v1021 = vadd.f32 %v975, %v1004
    %v1022 = vadd.f32 %v976, %v1006
    %v1023 = vadd.f32 %v977, %v1008
    %v1024 = vadd.f32 %v978, %v1010
    %v1025 = vstv %s187
    %v1026 = vmul.f32 %v146, %v1025
    %v1027 = vmul.f32 %v147, %v1025
    %v1028 = vmul.f32 %v148, %v1025
    %v1029 = vmul.f32 %v149, %v1025
    %v1030 = vmul.f32 %v150, %v1025
    %v1031 = vmul.f32 %v151, %v1025
    %v1032 = vmul.f32 %v152, %v1025
    %v1033 = vadd.f32 %v1018, %v1026
    %v1034 = vadd.f32 %v1019, %v1027
    %v1035 = vadd.f32 %v1020, %v1028
    %v1036 = vadd.f32 %v1021, %v1029
    %v1037 = vadd.f32 %v1022, %v1030
    %v1038 = vadd.f32 %v1023, %v1031
    %v1039 = vadd.f32 %v1024, %v1032
    %v1040 = vstv %s188
    %v1041 = vmul.f32 %v146, %v1040
    %v1042 = vmul.f32 %v147, %v1040
    %v1043 = vmul.f32 %v148, %v1040
    %v1044 = vmul.f32 %v149, %v1040
    %v1045 = vmul.f32 %v150, %v1040
    %v1046 = vmul.f32 %v151, %v1040
    %v1047 = vmul.f32 %v152, %v1040
    %v1055 = vrot.slane %v1041, 1
    %v1056 = vrot.slane %v1042, 1
    %v1057 = vsel %vm263, %v1055, %v1056
    %v1058 = vrot.slane %v1043, 1
    %v1059 = vsel %vm263, %v1056, %v1058
    %v1060 = vrot.slane %v1044, 1
    %v1061 = vsel %vm263, %v1058, %v1060
    %v1062 = vrot.slane %v1045, 1
    %v1063 = vsel %vm263, %v1060, %v1062
    %v1064 = vrot.slane %v1046, 1
    %v1065 = vsel %vm263, %v1062, %v1064
    %v1066 = vrot.slane %v1047, 1
    %v1067 = vsel %vm263, %v1064, %v1066
    %v1075 = vadd.f32 %v1033, %v1057
    %v1076 = vadd.f32 %v1034, %v1059
    %v1077 = vadd.f32 %v1035, %v1061
    %v1078 = vadd.f32 %v1036, %v1063
    %v1079 = vadd.f32 %v1037, %v1065
    %v1080 = vadd.f32 %v1038, %v1067
    %v1081 = vadd.f32 %v1039, %v1066
    %v1082 = vmul.f32 %v1075, %v159
    %v1083 = vmul.f32 %v1076, %v159
    %v1084 = vmul.f32 %v1077, %v159
    %v1085 = vmul.f32 %v1078, %v159
    %v1086 = vmul.f32 %v1079, %v159
    %v1087 = vmul.f32 %v1080, %v159
    %v1088 = vmul.f32 %v1081, %v159
    %v1089 = vadd.f32 %v1082, %v1083
    %v1090 = vadd.f32 %v1089, %v1084
    %v1091 = vadd.f32 %v1090, %v1085
    %v1092 = vadd.f32 %v1091, %v1086
    %v1093 = vadd.f32 %v1092, %v1087
    %v1094 = vsel %vm435, %v1088, 0.0
    %v1095 = vadd.f32 %v1093, %v1094
    %1096 = vadd.xlane.f32.xlu0 %v1095
    %v1097 = vpop.xlane.xlu0 %1096
    %v1098 = vrot.slane %v1097, 4
    %v1099 = vadd.f32 %v1097, %v1098
    %v1100 = vrot.slane %v1099, 2
    %v1101 = vadd.f32 %v1099, %v1100
    %v1102 = vrot.slane %v1101, 1
    %v1103 = vadd.f32 %v1101, %v1102
    %s1104 = vtos %v1103
    %v1105 = vmul.f32 %v1082, %v1082
    %v1106 = vmul.f32 %v1083, %v1083
    %v1107 = vmul.f32 %v1084, %v1084
    %v1108 = vmul.f32 %v1085, %v1085
    %v1109 = vmul.f32 %v1086, %v1086
    %v1110 = vmul.f32 %v1087, %v1087
    %v1111 = vmul.f32 %v1088, %v1088
    %v1112 = vadd.f32 %v1105, %v1106
    %v1113 = vadd.f32 %v1112, %v1107
    %v1114 = vadd.f32 %v1113, %v1108
    %v1115 = vadd.f32 %v1114, %v1109
    %v1116 = vadd.f32 %v1115, %v1110
    %v1117 = vsel %vm435, %v1111, 0.0
    %v1118 = vadd.f32 %v1116, %v1117
    %1119 = vadd.xlane.f32.xlu0 %v1118
    %v1120 = vpop.xlane.xlu0 %1119
    %v1121 = vrot.slane %v1120, 4
    %v1122 = vadd.f32 %v1120, %v1121
    %v1123 = vrot.slane %v1122, 2
    %v1124 = vadd.f32 %v1122, %v1123
    %v1125 = vrot.slane %v1124, 1
    %v1126 = vadd.f32 %v1124, %v1125
    %s1127 = vtos %v1126
    %s1128 = smul.f32 %s1104, %s164
    %s1129 = smul.f32 %s1127, %s164
    %s1130 = smul.f32 %s1128, %s1128
    %s1131 = ssub.f32 %s1129, %s1130
    %v1132 = vstv %s1128
    %v1133 = vsub.f32 %v1075, %v1132
    %v1134 = vsub.f32 %v1076, %v1132
    %v1135 = vsub.f32 %v1077, %v1132
    %v1136 = vsub.f32 %v1078, %v1132
    %v1137 = vsub.f32 %v1079, %v1132
    %v1138 = vsub.f32 %v1080, %v1132
    %v1139 = vsub.f32 %v1081, %v1132
    %s1140 = sadd.f32 %s1131, 1e-05
    %v1141 = vstv %s1140
    %v1142 = vrsqrt.pop %v1141
    %s1143 = vtos %v1142
    %s1144 = smul.f32 %s1143, %s203
    %v1145 = vstv %s1144
    %v1146 = vmul.f32 %v1133, %v1145
    %v1147 = vmul.f32 %v1134, %v1145
    %v1148 = vmul.f32 %v1135, %v1145
    %v1149 = vmul.f32 %v1136, %v1145
    %v1150 = vmul.f32 %v1137, %v1145
    %v1151 = vmul.f32 %v1138, %v1145
    %v1152 = vmul.f32 %v1139, %v1145
    %v1153 = vstv %s206
    %v1154 = vadd.f32 %v1146, %v1153
    %v1155 = vadd.f32 %v1147, %v1153
    %v1156 = vadd.f32 %v1148, %v1153
    %v1157 = vadd.f32 %v1149, %v1153
    %v1158 = vadd.f32 %v1150, %v1153
    %v1159 = vadd.f32 %v1151, %v1153
    %v1160 = vadd.f32 %v1152, %v1153
    %v1161 = vtanh.pop %v1154
    %v1162 = vtanh.pop %v1155
    %v1163 = vtanh.pop %v1156
    %v1164 = vtanh.pop %v1157
    %v1165 = vtanh.pop %v1158
    %v1166 = vtanh.pop %v1159
    %v1167 = vtanh.pop %v1160
    %s1168 = scalar_lea.vmem [#allocation18], 56
    %1169 = vst [vmem:[%s1168] sm:$0xff] %v1161
    %1170 = vst [vmem:[%s1168 + $0x8] sm:$0xff] %v1162
    %1171 = vst [vmem:[%s1168 + $0x10] sm:$0xff] %v1163
    %1172 = vst [vmem:[%s1168 + $0x18] sm:$0xff] %v1164
    %1173 = vst [vmem:[%s1168 + $0x20] sm:$0xff] %v1165
    %1174 = vst [vmem:[%s1168 + $0x28] sm:$0xff] %v1166
    %1175 = vst [vmem:[%s1168 + $0x30] sm:$0x7] %v1167
    %v1176 = vstv %s201
    %v1177 = vstv %s189
    %v1178 = vmul.f32 %v145, %v1177
    %v1179 = vmul.f32 %v146, %v1177
    %v1180 = vmul.f32 %v147, %v1177
    %v1181 = vmul.f32 %v148, %v1177
    %v1182 = vmul.f32 %v149, %v1177
    %v1183 = vmul.f32 %v150, %v1177
    %v1184 = vmul.f32 %v151, %v1177
    %v1185 = vadd.f32 %v1176, %v1178
    %v1186 = vadd.f32 %v1176, %v1179
    %v1187 = vadd.f32 %v1176, %v1180
    %v1188 = vadd.f32 %v1176, %v1181
    %v1189 = vadd.f32 %v1176, %v1182
    %v1190 = vadd.f32 %v1176, %v1183
    %v1191 = vadd.f32 %v1176, %v1184
    %v1192 = vstv %s190
    %v1193 = vmul.f32 %v145, %v1192
    %v1194 = vmul.f32 %v146, %v1192
    %v1195 = vmul.f32 %v147, %v1192
    %v1196 = vmul.f32 %v148, %v1192
    %v1197 = vmul.f32 %v149, %v1192
    %v1198 = vmul.f32 %v150, %v1192
    %v1199 = vmul.f32 %v151, %v1192
    %v1207 = vrot.slane %v1193, 1
    %v1208 = vrot.slane %v1194, 1
    %v1209 = vsel %vm263, %v1207, %v1208
    %v1210 = vrot.slane %v1195, 1
    %v1211 = vsel %vm263, %v1208, %v1210
    %v1212 = vrot.slane %v1196, 1
    %v1213 = vsel %vm263, %v1210, %v1212
    %v1214 = vrot.slane %v1197, 1
    %v1215 = vsel %vm263, %v1212, %v1214
    %v1216 = vrot.slane %v1198, 1
    %v1217 = vsel %vm263, %v1214, %v1216
    %v1218 = vrot.slane %v1199, 1
    %v1219 = vsel %vm263, %v1216, %v1218
    %v1227 = vadd.f32 %v1185, %v1209
    %v1228 = vadd.f32 %v1186, %v1211
    %v1229 = vadd.f32 %v1187, %v1213
    %v1230 = vadd.f32 %v1188, %v1215
    %v1231 = vadd.f32 %v1189, %v1217
    %v1232 = vadd.f32 %v1190, %v1219
    %v1233 = vadd.f32 %v1191, %v1218
    %v1234 = vstv %s191
    %v1235 = vmul.f32 %v145, %v1234
    %v1236 = vmul.f32 %v146, %v1234
    %v1237 = vmul.f32 %v147, %v1234
    %v1238 = vmul.f32 %v148, %v1234
    %v1239 = vmul.f32 %v149, %v1234
    %v1240 = vmul.f32 %v150, %v1234
    %v1241 = vmul.f32 %v151, %v1234
    %v1249 = vrot.slane %v1235, 2
    %v1250 = vrot.slane %v1236, 2
    %v1251 = vsel %vm306, %v1249, %v1250
    %v1252 = vrot.slane %v1237, 2
    %v1253 = vsel %vm306, %v1250, %v1252
    %v1254 = vrot.slane %v1238, 2
    %v1255 = vsel %vm306, %v1252, %v1254
    %v1256 = vrot.slane %v1239, 2
    %v1257 = vsel %vm306, %v1254, %v1256
    %v1258 = vrot.slane %v1240, 2
    %v1259 = vsel %vm306, %v1256, %v1258
    %v1260 = vrot.slane %v1241, 2
    %v1261 = vsel %vm306, %v1258, %v1260
    %v1269 = vadd.f32 %v1227, %v1251
    %v1270 = vadd.f32 %v1228, %v1253
    %v1271 = vadd.f32 %v1229, %v1255
    %v1272 = vadd.f32 %v1230, %v1257
    %v1273 = vadd.f32 %v1231, %v1259
    %v1274 = vadd.f32 %v1232, %v1261
    %v1275 = vadd.f32 %v1233, %v1260
    %v1276 = vstv %s192
    %v1277 = vmul.f32 %v145, %v1276
    %v1278 = vmul.f32 %v146, %v1276
    %v1279 = vmul.f32 %v147, %v1276
    %v1280 = vmul.f32 %v148, %v1276
    %v1281 = vmul.f32 %v149, %v1276
    %v1282 = vmul.f32 %v150, %v1276
    %v1283 = vmul.f32 %v151, %v1276
    %v1291 = vrot.slane %v1277, 3
    %v1292 = vrot.slane %v1278, 3
    %v1293 = vsel %vm349, %v1291, %v1292
    %v1294 = vrot.slane %v1279, 3
    %v1295 = vsel %vm349, %v1292, %v1294
    %v1296 = vrot.slane %v1280, 3
    %v1297 = vsel %vm349, %v1294, %v1296
    %v1298 = vrot.slane %v1281, 3
    %v1299 = vsel %vm349, %v1296, %v1298
    %v1300 = vrot.slane %v1282, 3
    %v1301 = vsel %vm349, %v1298, %v1300
    %v1302 = vrot.slane %v1283, 3
    %v1303 = vsel %vm349, %v1300, %v1302
    %v1311 = vadd.f32 %v1269, %v1293
    %v1312 = vadd.f32 %v1270, %v1295
    %v1313 = vadd.f32 %v1271, %v1297
    %v1314 = vadd.f32 %v1272, %v1299
    %v1315 = vadd.f32 %v1273, %v1301
    %v1316 = vadd.f32 %v1274, %v1303
    %v1317 = vadd.f32 %v1275, %v1302
    %v1318 = vstv %s193
    %v1319 = vmul.f32 %v145, %v1318
    %v1320 = vmul.f32 %v146, %v1318
    %v1321 = vmul.f32 %v147, %v1318
    %v1322 = vmul.f32 %v148, %v1318
    %v1323 = vmul.f32 %v149, %v1318
    %v1324 = vmul.f32 %v150, %v1318
    %v1325 = vmul.f32 %v151, %v1318
    %v1333 = vrot.slane %v1319, 4
    %v1334 = vrot.slane %v1320, 4
    %v1335 = vsel %vm392, %v1333, %v1334
    %v1336 = vrot.slane %v1321, 4
    %v1337 = vsel %vm392, %v1334, %v1336
    %v1338 = vrot.slane %v1322, 4
    %v1339 = vsel %vm392, %v1336, %v1338
    %v1340 = vrot.slane %v1323, 4
    %v1341 = vsel %vm392, %v1338, %v1340
    %v1342 = vrot.slane %v1324, 4
    %v1343 = vsel %vm392, %v1340, %v1342
    %v1344 = vrot.slane %v1325, 4
    %v1345 = vsel %vm392, %v1342, %v1344
    %v1353 = vadd.f32 %v1311, %v1335
    %v1354 = vadd.f32 %v1312, %v1337
    %v1355 = vadd.f32 %v1313, %v1339
    %v1356 = vadd.f32 %v1314, %v1341
    %v1357 = vadd.f32 %v1315, %v1343
    %v1358 = vadd.f32 %v1316, %v1345
    %v1359 = vadd.f32 %v1317, %v1344
    %v1360 = vstv %s194
    %v1361 = vmul.f32 %v145, %v1360
    %v1362 = vmul.f32 %v146, %v1360
    %v1363 = vmul.f32 %v147, %v1360
    %v1364 = vmul.f32 %v148, %v1360
    %v1365 = vmul.f32 %v149, %v1360
    %v1366 = vmul.f32 %v150, %v1360
    %v1367 = vmul.f32 %v151, %v1360
    %v1375 = vrot.slane %v1361, 5
    %v1376 = vrot.slane %v1362, 5
    %v1377 = vsel %vm435, %v1375, %v1376
    %v1378 = vrot.slane %v1363, 5
    %v1379 = vsel %vm435, %v1376, %v1378
    %v1380 = vrot.slane %v1364, 5
    %v1381 = vsel %vm435, %v1378, %v1380
    %v1382 = vrot.slane %v1365, 5
    %v1383 = vsel %vm435, %v1380, %v1382
    %v1384 = vrot.slane %v1366, 5
    %v1385 = vsel %vm435, %v1382, %v1384
    %v1386 = vrot.slane %v1367, 5
    %v1387 = vsel %vm435, %v1384, %v1386
    %v1395 = vadd.f32 %v1353, %v1377
    %v1396 = vadd.f32 %v1354, %v1379
    %v1397 = vadd.f32 %v1355, %v1381
    %v1398 = vadd.f32 %v1356, %v1383
    %v1399 = vadd.f32 %v1357, %v1385
    %v1400 = vadd.f32 %v1358, %v1387
    %v1401 = vadd.f32 %v1359, %v1386
    %v1402 = vstv %s195
    %v1403 = vmul.f32 %v145, %v1402
    %v1404 = vmul.f32 %v146, %v1402
    %v1405 = vmul.f32 %v147, %v1402
    %v1406 = vmul.f32 %v148, %v1402
    %v1407 = vmul.f32 %v149, %v1402
    %v1408 = vmul.f32 %v150, %v1402
    %v1409 = vmul.f32 %v151, %v1402
    %v1410 = vmul.f32 %v152, %v1402
    %v1419 = vrot.slane %v1403, 6
    %v1420 = vrot.slane %v1404, 6
    %v1421 = vsel %vm480, %v1419, %v1420
    %v1422 = vrot.slane %v1405, 6
    %v1423 = vsel %vm480, %v1420, %v1422
    %v1424 = vrot.slane %v1406, 6
    %v1425 = vsel %vm480, %v1422, %v1424
    %v1426 = vrot.slane %v1407, 6
    %v1427 = vsel %vm480, %v1424, %v1426
    %v1428 = vrot.slane %v1408, 6
    %v1429 = vsel %vm480, %v1426, %v1428
    %v1430 = vrot.slane %v1409, 6
    %v1431 = vsel %vm480, %v1428, %v1430
    %v1432 = vrot.slane %v1410, 6
    %v1433 = vsel %vm480, %v1430, %v1432
    %v1441 = vadd.f32 %v1395, %v1421
    %v1442 = vadd.f32 %v1396, %v1423
    %v1443 = vadd.f32 %v1397, %v1425
    %v1444 = vadd.f32 %v1398, %v1427
    %v1445 = vadd.f32 %v1399, %v1429
    %v1446 = vadd.f32 %v1400, %v1431
    %v1447 = vadd.f32 %v1401, %v1433
    %v1448 = vstv %s196
    %v1449 = vmul.f32 %v145, %v1448
    %v1450 = vmul.f32 %v146, %v1448
    %v1451 = vmul.f32 %v147, %v1448
    %v1452 = vmul.f32 %v148, %v1448
    %v1453 = vmul.f32 %v149, %v1448
    %v1454 = vmul.f32 %v150, %v1448
    %v1455 = vmul.f32 %v151, %v1448
    %v1456 = vmul.f32 %v152, %v1448
    %v1465 = vrot.slane %v1449, 7
    %v1466 = vrot.slane %v1450, 7
    %v1467 = vsel %vm527, %v1465, %v1466
    %v1468 = vrot.slane %v1451, 7
    %v1469 = vsel %vm527, %v1466, %v1468
    %v1470 = vrot.slane %v1452, 7
    %v1471 = vsel %vm527, %v1468, %v1470
    %v1472 = vrot.slane %v1453, 7
    %v1473 = vsel %vm527, %v1470, %v1472
    %v1474 = vrot.slane %v1454, 7
    %v1475 = vsel %vm527, %v1472, %v1474
    %v1476 = vrot.slane %v1455, 7
    %v1477 = vsel %vm527, %v1474, %v1476
    %v1478 = vrot.slane %v1456, 7
    %v1479 = vsel %vm527, %v1476, %v1478
    %v1487 = vadd.f32 %v1441, %v1467
    %v1488 = vadd.f32 %v1442, %v1469
    %v1489 = vadd.f32 %v1443, %v1471
    %v1490 = vadd.f32 %v1444, %v1473
    %v1491 = vadd.f32 %v1445, %v1475
    %v1492 = vadd.f32 %v1446, %v1477
    %v1493 = vadd.f32 %v1447, %v1479
    %v1494 = vstv %s197
    %v1495 = vmul.f32 %v146, %v1494
    %v1496 = vmul.f32 %v147, %v1494
    %v1497 = vmul.f32 %v148, %v1494
    %v1498 = vmul.f32 %v149, %v1494
    %v1499 = vmul.f32 %v150, %v1494
    %v1500 = vmul.f32 %v151, %v1494
    %v1501 = vmul.f32 %v152, %v1494
    %v1502 = vadd.f32 %v1487, %v1495
    %v1503 = vadd.f32 %v1488, %v1496
    %v1504 = vadd.f32 %v1489, %v1497
    %v1505 = vadd.f32 %v1490, %v1498
    %v1506 = vadd.f32 %v1491, %v1499
    %v1507 = vadd.f32 %v1492, %v1500
    %v1508 = vadd.f32 %v1493, %v1501
    %v1509 = vstv %s198
    %v1510 = vmul.f32 %v146, %v1509
    %v1511 = vmul.f32 %v147, %v1509
    %v1512 = vmul.f32 %v148, %v1509
    %v1513 = vmul.f32 %v149, %v1509
    %v1514 = vmul.f32 %v150, %v1509
    %v1515 = vmul.f32 %v151, %v1509
    %v1516 = vmul.f32 %v152, %v1509
    %v1524 = vrot.slane %v1510, 1
    %v1525 = vrot.slane %v1511, 1
    %v1526 = vsel %vm263, %v1524, %v1525
    %v1527 = vrot.slane %v1512, 1
    %v1528 = vsel %vm263, %v1525, %v1527
    %v1529 = vrot.slane %v1513, 1
    %v1530 = vsel %vm263, %v1527, %v1529
    %v1531 = vrot.slane %v1514, 1
    %v1532 = vsel %vm263, %v1529, %v1531
    %v1533 = vrot.slane %v1515, 1
    %v1534 = vsel %vm263, %v1531, %v1533
    %v1535 = vrot.slane %v1516, 1
    %v1536 = vsel %vm263, %v1533, %v1535
    %v1544 = vadd.f32 %v1502, %v1526
    %v1545 = vadd.f32 %v1503, %v1528
    %v1546 = vadd.f32 %v1504, %v1530
    %v1547 = vadd.f32 %v1505, %v1532
    %v1548 = vadd.f32 %v1506, %v1534
    %v1549 = vadd.f32 %v1507, %v1536
    %v1550 = vadd.f32 %v1508, %v1535
    %v1551 = vmul.f32 %v1544, %v159
    %v1552 = vmul.f32 %v1545, %v159
    %v1553 = vmul.f32 %v1546, %v159
    %v1554 = vmul.f32 %v1547, %v159
    %v1555 = vmul.f32 %v1548, %v159
    %v1556 = vmul.f32 %v1549, %v159
    %v1557 = vmul.f32 %v1550, %v159
    %v1558 = vadd.f32 %v1551, %v1552
    %v1559 = vadd.f32 %v1558, %v1553
    %v1560 = vadd.f32 %v1559, %v1554
    %v1561 = vadd.f32 %v1560, %v1555
    %v1562 = vadd.f32 %v1561, %v1556
    %v1563 = vsel %vm435, %v1557, 0.0
    %v1564 = vadd.f32 %v1562, %v1563
    %1565 = vadd.xlane.f32.xlu0 %v1564
    %v1566 = vpop.xlane.xlu0 %1565
    %v1567 = vrot.slane %v1566, 4
    %v1568 = vadd.f32 %v1566, %v1567
    %v1569 = vrot.slane %v1568, 2
    %v1570 = vadd.f32 %v1568, %v1569
    %v1571 = vrot.slane %v1570, 1
    %v1572 = vadd.f32 %v1570, %v1571
    %s1573 = vtos %v1572
    %v1574 = vmul.f32 %v1551, %v1551
    %v1575 = vmul.f32 %v1552, %v1552
    %v1576 = vmul.f32 %v1553, %v1553
    %v1577 = vmul.f32 %v1554, %v1554
    %v1578 = vmul.f32 %v1555, %v1555
    %v1579 = vmul.f32 %v1556, %v1556
    %v1580 = vmul.f32 %v1557, %v1557
    %v1581 = vadd.f32 %v1574, %v1575
    %v1582 = vadd.f32 %v1581, %v1576
    %v1583 = vadd.f32 %v1582, %v1577
    %v1584 = vadd.f32 %v1583, %v1578
    %v1585 = vadd.f32 %v1584, %v1579
    %v1586 = vsel %vm435, %v1580, 0.0
    %v1587 = vadd.f32 %v1585, %v1586
    %1588 = vadd.xlane.f32.xlu0 %v1587
    %v1589 = vpop.xlane.xlu0 %1588
    %v1590 = vrot.slane %v1589, 4
    %v1591 = vadd.f32 %v1589, %v1590
    %v1592 = vrot.slane %v1591, 2
    %v1593 = vadd.f32 %v1591, %v1592
    %v1594 = vrot.slane %v1593, 1
    %v1595 = vadd.f32 %v1593, %v1594
    %s1596 = vtos %v1595
    %s1597 = smul.f32 %s1573, %s164
    %s1598 = smul.f32 %s1596, %s164
    %s1599 = smul.f32 %s1597, %s1597
    %s1600 = ssub.f32 %s1598, %s1599
    %v1601 = vstv %s1597
    %v1602 = vsub.f32 %v1544, %v1601
    %v1603 = vsub.f32 %v1545, %v1601
    %v1604 = vsub.f32 %v1546, %v1601
    %v1605 = vsub.f32 %v1547, %v1601
    %v1606 = vsub.f32 %v1548, %v1601
    %v1607 = vsub.f32 %v1549, %v1601
    %v1608 = vsub.f32 %v1550, %v1601
    %s1609 = sadd.f32 %s1600, 1e-05
    %v1610 = vstv %s1609
    %v1611 = vrsqrt.pop %v1610
    %s1612 = vtos %v1611
    %s1613 = smul.f32 %s1612, %s204
    %v1614 = vstv %s1613
    %v1615 = vmul.f32 %v1602, %v1614
    %v1616 = vmul.f32 %v1603, %v1614
    %v1617 = vmul.f32 %v1604, %v1614
    %v1618 = vmul.f32 %v1605, %v1614
    %v1619 = vmul.f32 %v1606, %v1614
    %v1620 = vmul.f32 %v1607, %v1614
    %v1621 = vmul.f32 %v1608, %v1614
    %v1622 = vstv %s207
    %v1623 = vadd.f32 %v1615, %v1622
    %v1624 = vadd.f32 %v1616, %v1622
    %v1625 = vadd.f32 %v1617, %v1622
    %v1626 = vadd.f32 %v1618, %v1622
    %v1627 = vadd.f32 %v1619, %v1622
    %v1628 = vadd.f32 %v1620, %v1622
    %v1629 = vadd.f32 %v1621, %v1622
    %v1630 = vtanh.pop %v1623
    %v1631 = vtanh.pop %v1624
    %v1632 = vtanh.pop %v1625
    %v1633 = vtanh.pop %v1626
    %v1634 = vtanh.pop %v1627
    %v1635 = vtanh.pop %v1628
    %v1636 = vtanh.pop %v1629
    %s1637 = scalar_lea.vmem [#allocation18], 112
    %1638 = vst [vmem:[%s1637] sm:$0xff] %v1630
    %1639 = vst [vmem:[%s1637 + $0x8] sm:$0xff] %v1631
    %1640 = vst [vmem:[%s1637 + $0x10] sm:$0xff] %v1632
    %1641 = vst [vmem:[%s1637 + $0x18] sm:$0xff] %v1633
    %1642 = vst [vmem:[%s1637 + $0x20] sm:$0xff] %v1634
    %1643 = vst [vmem:[%s1637 + $0x28] sm:$0xff] %v1635
    %1644 = vst [vmem:[%s1637 + $0x30] sm:$0x7] %v1636
    %v1645 = vstv %s226
    %v1646 = vstv %s208
    %v1647 = vmul.f32 %v693, %v1646
    %v1648 = vmul.f32 %v694, %v1646
    %v1649 = vmul.f32 %v695, %v1646
    %v1650 = vmul.f32 %v696, %v1646
    %v1651 = vmul.f32 %v697, %v1646
    %v1652 = vmul.f32 %v698, %v1646
    %v1653 = vmul.f32 %v699, %v1646
    %v1654 = vadd.f32 %v1645, %v1647
    %v1655 = vadd.f32 %v1645, %v1648
    %v1656 = vadd.f32 %v1645, %v1649
    %v1657 = vadd.f32 %v1645, %v1650
    %v1658 = vadd.f32 %v1645, %v1651
    %v1659 = vadd.f32 %v1645, %v1652
    %v1660 = vadd.f32 %v1645, %v1653
    %v1661 = vstv %s209
    %v1662 = vmul.f32 %v693, %v1661
    %v1663 = vmul.f32 %v694, %v1661
    %v1664 = vmul.f32 %v695, %v1661
    %v1665 = vmul.f32 %v696, %v1661
    %v1666 = vmul.f32 %v697, %v1661
    %v1667 = vmul.f32 %v698, %v1661
    %v1668 = vmul.f32 %v699, %v1661
    %v1676 = vrot.slane %v1662, 1
    %v1677 = vrot.slane %v1663, 1
    %v1678 = vsel %vm263, %v1676, %v1677
    %v1679 = vrot.slane %v1664, 1
    %v1680 = vsel %vm263, %v1677, %v1679
    %v1681 = vrot.slane %v1665, 1
    %v1682 = vsel %vm263, %v1679, %v1681
    %v1683 = vrot.slane %v1666, 1
    %v1684 = vsel %vm263, %v1681, %v1683
    %v1685 = vrot.slane %v1667, 1
    %v1686 = vsel %vm263, %v1683, %v1685
    %v1687 = vrot.slane %v1668, 1
    %v1688 = vsel %vm263, %v1685, %v1687
    %v1696 = vadd.f32 %v1654, %v1678
    %v1697 = vadd.f32 %v1655, %v1680
    %v1698 = vadd.f32 %v1656, %v1682
    %v1699 = vadd.f32 %v1657, %v1684
    %v1700 = vadd.f32 %v1658, %v1686
    %v1701 = vadd.f32 %v1659, %v1688
    %v1702 = vadd.f32 %v1660, %v1687
    %v1703 = vstv %s210
    %v1704 = vmul.f32 %v693, %v1703
    %v1705 = vmul.f32 %v694, %v1703
    %v1706 = vmul.f32 %v695, %v1703
    %v1707 = vmul.f32 %v696, %v1703
    %v1708 = vmul.f32 %v697, %v1703
    %v1709 = vmul.f32 %v698, %v1703
    %v1710 = vmul.f32 %v699, %v1703
    %v1718 = vrot.slane %v1704, 2
    %v1719 = vrot.slane %v1705, 2
    %v1720 = vsel %vm306, %v1718, %v1719
    %v1721 = vrot.slane %v1706, 2
    %v1722 = vsel %vm306, %v1719, %v1721
    %v1723 = vrot.slane %v1707, 2
    %v1724 = vsel %vm306, %v1721, %v1723
    %v1725 = vrot.slane %v1708, 2
    %v1726 = vsel %vm306, %v1723, %v1725
    %v1727 = vrot.slane %v1709, 2
    %v1728 = vsel %vm306, %v1725, %v1727
    %v1729 = vrot.slane %v1710, 2
    %v1730 = vsel %vm306, %v1727, %v1729
    %v1738 = vadd.f32 %v1696, %v1720
    %v1739 = vadd.f32 %v1697, %v1722
    %v1740 = vadd.f32 %v1698, %v1724
    %v1741 = vadd.f32 %v1699, %v1726
    %v1742 = vadd.f32 %v1700, %v1728
    %v1743 = vadd.f32 %v1701, %v1730
    %v1744 = vadd.f32 %v1702, %v1729
    %v1745 = vstv %s211
    %v1746 = vmul.f32 %v1161, %v1745
    %v1747 = vmul.f32 %v1162, %v1745
    %v1748 = vmul.f32 %v1163, %v1745
    %v1749 = vmul.f32 %v1164, %v1745
    %v1750 = vmul.f32 %v1165, %v1745
    %v1751 = vmul.f32 %v1166, %v1745
    %v1752 = vmul.f32 %v1167, %v1745
    %v1753 = vadd.f32 %v1738, %v1746
    %v1754 = vadd.f32 %v1739, %v1747
    %v1755 = vadd.f32 %v1740, %v1748
    %v1756 = vadd.f32 %v1741, %v1749
    %v1757 = vadd.f32 %v1742, %v1750
    %v1758 = vadd.f32 %v1743, %v1751
    %v1759 = vadd.f32 %v1744, %v1752
    %v1760 = vstv %s212
    %v1761 = vmul.f32 %v1161, %v1760
    %v1762 = vmul.f32 %v1162, %v1760
    %v1763 = vmul.f32 %v1163, %v1760
    %v1764 = vmul.f32 %v1164, %v1760
    %v1765 = vmul.f32 %v1165, %v1760
    %v1766 = vmul.f32 %v1166, %v1760
    %v1767 = vmul.f32 %v1167, %v1760
    %v1775 = vrot.slane %v1761, 1
    %v1776 = vrot.slane %v1762, 1
    %v1777 = vsel %vm263, %v1775, %v1776
    %v1778 = vrot.slane %v1763, 1
    %v1779 = vsel %vm263, %v1776, %v1778
    %v1780 = vrot.slane %v1764, 1
    %v1781 = vsel %vm263, %v1778, %v1780
    %v1782 = vrot.slane %v1765, 1
    %v1783 = vsel %vm263, %v1780, %v1782
    %v1784 = vrot.slane %v1766, 1
    %v1785 = vsel %vm263, %v1782, %v1784
    %v1786 = vrot.slane %v1767, 1
    %v1787 = vsel %vm263, %v1784, %v1786
    %v1795 = vadd.f32 %v1753, %v1777
    %v1796 = vadd.f32 %v1754, %v1779
    %v1797 = vadd.f32 %v1755, %v1781
    %v1798 = vadd.f32 %v1756, %v1783
    %v1799 = vadd.f32 %v1757, %v1785
    %v1800 = vadd.f32 %v1758, %v1787
    %v1801 = vadd.f32 %v1759, %v1786
    %v1802 = vstv %s213
    %v1803 = vmul.f32 %v1161, %v1802
    %v1804 = vmul.f32 %v1162, %v1802
    %v1805 = vmul.f32 %v1163, %v1802
    %v1806 = vmul.f32 %v1164, %v1802
    %v1807 = vmul.f32 %v1165, %v1802
    %v1808 = vmul.f32 %v1166, %v1802
    %v1809 = vmul.f32 %v1167, %v1802
    %v1817 = vrot.slane %v1803, 2
    %v1818 = vrot.slane %v1804, 2
    %v1819 = vsel %vm306, %v1817, %v1818
    %v1820 = vrot.slane %v1805, 2
    %v1821 = vsel %vm306, %v1818, %v1820
    %v1822 = vrot.slane %v1806, 2
    %v1823 = vsel %vm306, %v1820, %v1822
    %v1824 = vrot.slane %v1807, 2
    %v1825 = vsel %vm306, %v1822, %v1824
    %v1826 = vrot.slane %v1808, 2
    %v1827 = vsel %vm306, %v1824, %v1826
    %v1828 = vrot.slane %v1809, 2
    %v1829 = vsel %vm306, %v1826, %v1828
    %v1837 = vadd.f32 %v1795, %v1819
    %v1838 = vadd.f32 %v1796, %v1821
    %v1839 = vadd.f32 %v1797, %v1823
    %v1840 = vadd.f32 %v1798, %v1825
    %v1841 = vadd.f32 %v1799, %v1827
    %v1842 = vadd.f32 %v1800, %v1829
    %v1843 = vadd.f32 %v1801, %v1828
    %v1844 = vstv %s214
    %v1845 = vmul.f32 %v1630, %v1844
    %v1846 = vmul.f32 %v1631, %v1844
    %v1847 = vmul.f32 %v1632, %v1844
    %v1848 = vmul.f32 %v1633, %v1844
    %v1849 = vmul.f32 %v1634, %v1844
    %v1850 = vmul.f32 %v1635, %v1844
    %v1851 = vmul.f32 %v1636, %v1844
    %v1852 = vadd.f32 %v1837, %v1845
    %v1853 = vadd.f32 %v1838, %v1846
    %v1854 = vadd.f32 %v1839, %v1847
    %v1855 = vadd.f32 %v1840, %v1848
    %v1856 = vadd.f32 %v1841, %v1849
    %v1857 = vadd.f32 %v1842, %v1850
    %v1858 = vadd.f32 %v1843, %v1851
    %v1859 = vstv %s215
    %v1860 = vmul.f32 %v1630, %v1859
    %v1861 = vmul.f32 %v1631, %v1859
    %v1862 = vmul.f32 %v1632, %v1859
    %v1863 = vmul.f32 %v1633, %v1859
    %v1864 = vmul.f32 %v1634, %v1859
    %v1865 = vmul.f32 %v1635, %v1859
    %v1866 = vmul.f32 %v1636, %v1859
    %v1874 = vrot.slane %v1860, 1
    %v1875 = vrot.slane %v1861, 1
    %v1876 = vsel %vm263, %v1874, %v1875
    %v1877 = vrot.slane %v1862, 1
    %v1878 = vsel %vm263, %v1875, %v1877
    %v1879 = vrot.slane %v1863, 1
    %v1880 = vsel %vm263, %v1877, %v1879
    %v1881 = vrot.slane %v1864, 1
    %v1882 = vsel %vm263, %v1879, %v1881
    %v1883 = vrot.slane %v1865, 1
    %v1884 = vsel %vm263, %v1881, %v1883
    %v1885 = vrot.slane %v1866, 1
    %v1886 = vsel %vm263, %v1883, %v1885
    %v1894 = vadd.f32 %v1852, %v1876
    %v1895 = vadd.f32 %v1853, %v1878
    %v1896 = vadd.f32 %v1854, %v1880
    %v1897 = vadd.f32 %v1855, %v1882
    %v1898 = vadd.f32 %v1856, %v1884
    %v1899 = vadd.f32 %v1857, %v1886
    %v1900 = vadd.f32 %v1858, %v1885
    %v1901 = vstv %s216
    %v1902 = vmul.f32 %v1630, %v1901
    %v1903 = vmul.f32 %v1631, %v1901
    %v1904 = vmul.f32 %v1632, %v1901
    %v1905 = vmul.f32 %v1633, %v1901
    %v1906 = vmul.f32 %v1634, %v1901
    %v1907 = vmul.f32 %v1635, %v1901
    %v1908 = vmul.f32 %v1636, %v1901
    %v1916 = vrot.slane %v1902, 2
    %v1917 = vrot.slane %v1903, 2
    %v1918 = vsel %vm306, %v1916, %v1917
    %v1919 = vrot.slane %v1904, 2
    %v1920 = vsel %vm306, %v1917, %v1919
    %v1921 = vrot.slane %v1905, 2
    %v1922 = vsel %vm306, %v1919, %v1921
    %v1923 = vrot.slane %v1906, 2
    %v1924 = vsel %vm306, %v1921, %v1923
    %v1925 = vrot.slane %v1907, 2
    %v1926 = vsel %vm306, %v1923, %v1925
    %v1927 = vrot.slane %v1908, 2
    %v1928 = vsel %vm306, %v1925, %v1927
    %v1936 = vadd.f32 %v1894, %v1918
    %v1937 = vadd.f32 %v1895, %v1920
    %v1938 = vadd.f32 %v1896, %v1922
    %v1939 = vadd.f32 %v1897, %v1924
    %v1940 = vadd.f32 %v1898, %v1926
    %v1941 = vadd.f32 %v1899, %v1928
    %v1942 = vadd.f32 %v1900, %v1927
    %v1943 = vmul.f32 %v1936, %v159
    %v1944 = vmul.f32 %v1937, %v159
    %v1945 = vmul.f32 %v1938, %v159
    %v1946 = vmul.f32 %v1939, %v159
    %v1947 = vmul.f32 %v1940, %v159
    %v1948 = vmul.f32 %v1941, %v159
    %v1949 = vmul.f32 %v1942, %v159
    %v1950 = vadd.f32 %v1943, %v1944
    %v1951 = vadd.f32 %v1950, %v1945
    %v1952 = vadd.f32 %v1951, %v1946
    %v1953 = vadd.f32 %v1952, %v1947
    %v1954 = vadd.f32 %v1953, %v1948
    %v1955 = vsel %vm527, %v1949, 0.0
    %v1956 = vadd.f32 %v1954, %v1955
    %1957 = vadd.xlane.f32.xlu0 %v1956
    %v1958 = vpop.xlane.xlu0 %1957
    %v1959 = vrot.slane %v1958, 4
    %v1960 = vadd.f32 %v1958, %v1959
    %v1961 = vrot.slane %v1960, 2
    %v1962 = vadd.f32 %v1960, %v1961
    %v1963 = vrot.slane %v1962, 1
    %v1964 = vadd.f32 %v1962, %v1963
    %s1965 = vtos %v1964
    %v1966 = vmul.f32 %v1943, %v1943
    %v1967 = vmul.f32 %v1944, %v1944
    %v1968 = vmul.f32 %v1945, %v1945
    %v1969 = vmul.f32 %v1946, %v1946
    %v1970 = vmul.f32 %v1947, %v1947
    %v1971 = vmul.f32 %v1948, %v1948
    %v1972 = vmul.f32 %v1949, %v1949
    %v1973 = vadd.f32 %v1966, %v1967
    %v1974 = vadd.f32 %v1973, %v1968
    %v1975 = vadd.f32 %v1974, %v1969
    %v1976 = vadd.f32 %v1975, %v1970
    %v1977 = vadd.f32 %v1976, %v1971
    %v1978 = vsel %vm527, %v1972, 0.0
    %v1979 = vadd.f32 %v1977, %v1978
    %1980 = vadd.xlane.f32.xlu0 %v1979
    %v1981 = vpop.xlane.xlu0 %1980
    %v1982 = vrot.slane %v1981, 4
    %v1983 = vadd.f32 %v1981, %v1982
    %v1984 = vrot.slane %v1983, 2
    %v1985 = vadd.f32 %v1983, %v1984
    %v1986 = vrot.slane %v1985, 1
    %v1987 = vadd.f32 %v1985, %v1986
    %s1988 = vtos %v1987
    %s1989 = smul.f32 %s1965, %s168
    %s1990 = smul.f32 %s1988, %s168
    %s1991 = smul.f32 %s1989, %s1989
    %s1992 = ssub.f32 %s1990, %s1991
    %v1993 = vstv %s1989
    %v1994 = vsub.f32 %v1936, %v1993
    %v1995 = vsub.f32 %v1937, %v1993
    %v1996 = vsub.f32 %v1938, %v1993
    %v1997 = vsub.f32 %v1939, %v1993
    %v1998 = vsub.f32 %v1940, %v1993
    %v1999 = vsub.f32 %v1941, %v1993
    %v2000 = vsub.f32 %v1942, %v1993
    %s2001 = sadd.f32 %s1992, 1e-05
    %v2002 = vstv %s2001
    %v2003 = vrsqrt.pop %v2002
    %s2004 = vtos %v2003
    %s2005 = smul.f32 %s2004, %s228
    %v2006 = vstv %s2005
    %v2007 = vmul.f32 %v1994, %v2006
    %v2008 = vmul.f32 %v1995, %v2006
    %v2009 = vmul.f32 %v1996, %v2006
    %v2010 = vmul.f32 %v1997, %v2006
    %v2011 = vmul.f32 %v1998, %v2006
    %v2012 = vmul.f32 %v1999, %v2006
    %v2013 = vmul.f32 %v2000, %v2006
    %v2014 = vstv %s230
    %v2015 = vadd.f32 %v2007, %v2014
    %v2016 = vadd.f32 %v2008, %v2014
    %v2017 = vadd.f32 %v2009, %v2014
    %v2018 = vadd.f32 %v2010, %v2014
    %v2019 = vadd.f32 %v2011, %v2014
    %v2020 = vadd.f32 %v2012, %v2014
    %v2021 = vadd.f32 %v2013, %v2014
    %v2022 = vtanh.pop %v2015
    %v2023 = vtanh.pop %v2016
    %v2024 = vtanh.pop %v2017
    %v2025 = vtanh.pop %v2018
    %v2026 = vtanh.pop %v2019
    %v2027 = vtanh.pop %v2020
    %v2028 = vtanh.pop %v2021
    %2029 = vst [vmem:[%s13] sm:$0xff] %v2022
    %2030 = vst [vmem:[%s13 + $0x8] sm:$0xff] %v2023
    %2031 = vst [vmem:[%s13 + $0x10] sm:$0xff] %v2024
    %2032 = vst [vmem:[%s13 + $0x18] sm:$0xff] %v2025
    %2033 = vst [vmem:[%s13 + $0x20] sm:$0xff] %v2026
    %2034 = vst [vmem:[%s13 + $0x28] sm:$0xff] %v2027
    %2035 = vst [vmem:[%s13 + $0x30] sm:$0x1] %v2028
    %v2036 = vstv %s227
    %v2037 = vstv %s217
    %v2038 = vmul.f32 %v693, %v2037
    %v2039 = vmul.f32 %v694, %v2037
    %v2040 = vmul.f32 %v695, %v2037
    %v2041 = vmul.f32 %v696, %v2037
    %v2042 = vmul.f32 %v697, %v2037
    %v2043 = vmul.f32 %v698, %v2037
    %v2044 = vmul.f32 %v699, %v2037
    %v2045 = vadd.f32 %v2036, %v2038
    %v2046 = vadd.f32 %v2036, %v2039
    %v2047 = vadd.f32 %v2036, %v2040
    %v2048 = vadd.f32 %v2036, %v2041
    %v2049 = vadd.f32 %v2036, %v2042
    %v2050 = vadd.f32 %v2036, %v2043
    %v2051 = vadd.f32 %v2036, %v2044
    %v2052 = vstv %s218
    %v2053 = vmul.f32 %v693, %v2052
    %v2054 = vmul.f32 %v694, %v2052
    %v2055 = vmul.f32 %v695, %v2052
    %v2056 = vmul.f32 %v696, %v2052
    %v2057 = vmul.f32 %v697, %v2052
    %v2058 = vmul.f32 %v698, %v2052
    %v2059 = vmul.f32 %v699, %v2052
    %v2067 = vrot.slane %v2053, 1
    %v2068 = vrot.slane %v2054, 1
    %v2069 = vsel %vm263, %v2067, %v2068
    %v2070 = vrot.slane %v2055, 1
    %v2071 = vsel %vm263, %v2068, %v2070
    %v2072 = vrot.slane %v2056, 1
    %v2073 = vsel %vm263, %v2070, %v2072
    %v2074 = vrot.slane %v2057, 1
    %v2075 = vsel %vm263, %v2072, %v2074
    %v2076 = vrot.slane %v2058, 1
    %v2077 = vsel %vm263, %v2074, %v2076
    %v2078 = vrot.slane %v2059, 1
    %v2079 = vsel %vm263, %v2076, %v2078
    %v2087 = vadd.f32 %v2045, %v2069
    %v2088 = vadd.f32 %v2046, %v2071
    %v2089 = vadd.f32 %v2047, %v2073
    %v2090 = vadd.f32 %v2048, %v2075
    %v2091 = vadd.f32 %v2049, %v2077
    %v2092 = vadd.f32 %v2050, %v2079
    %v2093 = vadd.f32 %v2051, %v2078
    %v2094 = vstv %s219
    %v2095 = vmul.f32 %v693, %v2094
    %v2096 = vmul.f32 %v694, %v2094
    %v2097 = vmul.f32 %v695, %v2094
    %v2098 = vmul.f32 %v696, %v2094
    %v2099 = vmul.f32 %v697, %v2094
    %v2100 = vmul.f32 %v698, %v2094
    %v2101 = vmul.f32 %v699, %v2094
    %v2109 = vrot.slane %v2095, 2
    %v2110 = vrot.slane %v2096, 2
    %v2111 = vsel %vm306, %v2109, %v2110
    %v2112 = vrot.slane %v2097, 2
    %v2113 = vsel %vm306, %v2110, %v2112
    %v2114 = vrot.slane %v2098, 2
    %v2115 = vsel %vm306, %v2112, %v2114
    %v2116 = vrot.slane %v2099, 2
    %v2117 = vsel %vm306, %v2114, %v2116
    %v2118 = vrot.slane %v2100, 2
    %v2119 = vsel %vm306, %v2116, %v2118
    %v2120 = vrot.slane %v2101, 2
    %v2121 = vsel %vm306, %v2118, %v2120
    %v2129 = vadd.f32 %v2087, %v2111
    %v2130 = vadd.f32 %v2088, %v2113
    %v2131 = vadd.f32 %v2089, %v2115
    %v2132 = vadd.f32 %v2090, %v2117
    %v2133 = vadd.f32 %v2091, %v2119
    %v2134 = vadd.f32 %v2092, %v2121
    %v2135 = vadd.f32 %v2093, %v2120
    %v2136 = vstv %s220
    %v2137 = vmul.f32 %v1161, %v2136
    %v2138 = vmul.f32 %v1162, %v2136
    %v2139 = vmul.f32 %v1163, %v2136
    %v2140 = vmul.f32 %v1164, %v2136
    %v2141 = vmul.f32 %v1165, %v2136
    %v2142 = vmul.f32 %v1166, %v2136
    %v2143 = vmul.f32 %v1167, %v2136
    %v2144 = vadd.f32 %v2129, %v2137
    %v2145 = vadd.f32 %v2130, %v2138
    %v2146 = vadd.f32 %v2131, %v2139
    %v2147 = vadd.f32 %v2132, %v2140
    %v2148 = vadd.f32 %v2133, %v2141
    %v2149 = vadd.f32 %v2134, %v2142
    %v2150 = vadd.f32 %v2135, %v2143
    %v2151 = vstv %s221
    %v2152 = vmul.f32 %v1161, %v2151
    %v2153 = vmul.f32 %v1162, %v2151
    %v2154 = vmul.f32 %v1163, %v2151
    %v2155 = vmul.f32 %v1164, %v2151
    %v2156 = vmul.f32 %v1165, %v2151
    %v2157 = vmul.f32 %v1166, %v2151
    %v2158 = vmul.f32 %v1167, %v2151
    %v2166 = vrot.slane %v2152, 1
    %v2167 = vrot.slane %v2153, 1
    %v2168 = vsel %vm263, %v2166, %v2167
    %v2169 = vrot.slane %v2154, 1
    %v2170 = vsel %vm263, %v2167, %v2169
    %v2171 = vrot.slane %v2155, 1
    %v2172 = vsel %vm263, %v2169, %v2171
    %v2173 = vrot.slane %v2156, 1
    %v2174 = vsel %vm263, %v2171, %v2173
    %v2175 = vrot.slane %v2157, 1
    %v2176 = vsel %vm263, %v2173, %v2175
    %v2177 = vrot.slane %v2158, 1
    %v2178 = vsel %vm263, %v2175, %v2177
    %v2186 = vadd.f32 %v2144, %v2168
    %v2187 = vadd.f32 %v2145, %v2170
    %v2188 = vadd.f32 %v2146, %v2172
    %v2189 = vadd.f32 %v2147, %v2174
    %v2190 = vadd.f32 %v2148, %v2176
    %v2191 = vadd.f32 %v2149, %v2178
    %v2192 = vadd.f32 %v2150, %v2177
    %v2193 = vstv %s222
    %v2194 = vmul.f32 %v1161, %v2193
    %v2195 = vmul.f32 %v1162, %v2193
    %v2196 = vmul.f32 %v1163, %v2193
    %v2197 = vmul.f32 %v1164, %v2193
    %v2198 = vmul.f32 %v1165, %v2193
    %v2199 = vmul.f32 %v1166, %v2193
    %v2200 = vmul.f32 %v1167, %v2193
    %v2208 = vrot.slane %v2194, 2
    %v2209 = vrot.slane %v2195, 2
    %v2210 = vsel %vm306, %v2208, %v2209
    %v2211 = vrot.slane %v2196, 2
    %v2212 = vsel %vm306, %v2209, %v2211
    %v2213 = vrot.slane %v2197, 2
    %v2214 = vsel %vm306, %v2211, %v2213
    %v2215 = vrot.slane %v2198, 2
    %v2216 = vsel %vm306, %v2213, %v2215
    %v2217 = vrot.slane %v2199, 2
    %v2218 = vsel %vm306, %v2215, %v2217
    %v2219 = vrot.slane %v2200, 2
    %v2220 = vsel %vm306, %v2217, %v2219
    %v2228 = vadd.f32 %v2186, %v2210
    %v2229 = vadd.f32 %v2187, %v2212
    %v2230 = vadd.f32 %v2188, %v2214
    %v2231 = vadd.f32 %v2189, %v2216
    %v2232 = vadd.f32 %v2190, %v2218
    %v2233 = vadd.f32 %v2191, %v2220
    %v2234 = vadd.f32 %v2192, %v2219
    %v2235 = vstv %s223
    %v2236 = vmul.f32 %v1630, %v2235
    %v2237 = vmul.f32 %v1631, %v2235
    %v2238 = vmul.f32 %v1632, %v2235
    %v2239 = vmul.f32 %v1633, %v2235
    %v2240 = vmul.f32 %v1634, %v2235
    %v2241 = vmul.f32 %v1635, %v2235
    %v2242 = vmul.f32 %v1636, %v2235
    %v2243 = vadd.f32 %v2228, %v2236
    %v2244 = vadd.f32 %v2229, %v2237
    %v2245 = vadd.f32 %v2230, %v2238
    %v2246 = vadd.f32 %v2231, %v2239
    %v2247 = vadd.f32 %v2232, %v2240
    %v2248 = vadd.f32 %v2233, %v2241
    %v2249 = vadd.f32 %v2234, %v2242
    %v2250 = vstv %s224
    %v2251 = vmul.f32 %v1630, %v2250
    %v2252 = vmul.f32 %v1631, %v2250
    %v2253 = vmul.f32 %v1632, %v2250
    %v2254 = vmul.f32 %v1633, %v2250
    %v2255 = vmul.f32 %v1634, %v2250
    %v2256 = vmul.f32 %v1635, %v2250
    %v2257 = vmul.f32 %v1636, %v2250
    %v2265 = vrot.slane %v2251, 1
    %v2266 = vrot.slane %v2252, 1
    %v2267 = vsel %vm263, %v2265, %v2266
    %v2268 = vrot.slane %v2253, 1
    %v2269 = vsel %vm263, %v2266, %v2268
    %v2270 = vrot.slane %v2254, 1
    %v2271 = vsel %vm263, %v2268, %v2270
    %v2272 = vrot.slane %v2255, 1
    %v2273 = vsel %vm263, %v2270, %v2272
    %v2274 = vrot.slane %v2256, 1
    %v2275 = vsel %vm263, %v2272, %v2274
    %v2276 = vrot.slane %v2257, 1
    %v2277 = vsel %vm263, %v2274, %v2276
    %v2285 = vadd.f32 %v2243, %v2267
    %v2286 = vadd.f32 %v2244, %v2269
    %v2287 = vadd.f32 %v2245, %v2271
    %v2288 = vadd.f32 %v2246, %v2273
    %v2289 = vadd.f32 %v2247, %v2275
    %v2290 = vadd.f32 %v2248, %v2277
    %v2291 = vadd.f32 %v2249, %v2276
    %v2292 = vstv %s225
    %v2293 = vmul.f32 %v1630, %v2292
    %v2294 = vmul.f32 %v1631, %v2292
    %v2295 = vmul.f32 %v1632, %v2292
    %v2296 = vmul.f32 %v1633, %v2292
    %v2297 = vmul.f32 %v1634, %v2292
    %v2298 = vmul.f32 %v1635, %v2292
    %v2299 = vmul.f32 %v1636, %v2292
    %v2307 = vrot.slane %v2293, 2
    %v2308 = vrot.slane %v2294, 2
    %v2309 = vsel %vm306, %v2307, %v2308
    %v2310 = vrot.slane %v2295, 2
    %v2311 = vsel %vm306, %v2308, %v2310
    %v2312 = vrot.slane %v2296, 2
    %v2313 = vsel %vm306, %v2310, %v2312
    %v2314 = vrot.slane %v2297, 2
    %v2315 = vsel %vm306, %v2312, %v2314
    %v2316 = vrot.slane %v2298, 2
    %v2317 = vsel %vm306, %v2314, %v2316
    %v2318 = vrot.slane %v2299, 2
    %v2319 = vsel %vm306, %v2316, %v2318
    %v2327 = vadd.f32 %v2285, %v2309
    %v2328 = vadd.f32 %v2286, %v2311
    %v2329 = vadd.f32 %v2287, %v2313
    %v2330 = vadd.f32 %v2288, %v2315
    %v2331 = vadd.f32 %v2289, %v2317
    %v2332 = vadd.f32 %v2290, %v2319
    %v2333 = vadd.f32 %v2291, %v2318
    %v2334 = vmul.f32 %v2327, %v159
    %v2335 = vmul.f32 %v2328, %v159
    %v2336 = vmul.f32 %v2329, %v159
    %v2337 = vmul.f32 %v2330, %v159
    %v2338 = vmul.f32 %v2331, %v159
    %v2339 = vmul.f32 %v2332, %v159
    %v2340 = vmul.f32 %v2333, %v159
    %v2341 = vadd.f32 %v2334, %v2335
    %v2342 = vadd.f32 %v2341, %v2336
    %v2343 = vadd.f32 %v2342, %v2337
    %v2344 = vadd.f32 %v2343, %v2338
    %v2345 = vadd.f32 %v2344, %v2339
    %v2346 = vsel %vm527, %v2340, 0.0
    %v2347 = vadd.f32 %v2345, %v2346
    %2348 = vadd.xlane.f32.xlu0 %v2347
    %v2349 = vpop.xlane.xlu0 %2348
    %v2350 = vrot.slane %v2349, 4
    %v2351 = vadd.f32 %v2349, %v2350
    %v2352 = vrot.slane %v2351, 2
    %v2353 = vadd.f32 %v2351, %v2352
    %v2354 = vrot.slane %v2353, 1
    %v2355 = vadd.f32 %v2353, %v2354
    %s2356 = vtos %v2355
    %v2357 = vmul.f32 %v2334, %v2334
    %v2358 = vmul.f32 %v2335, %v2335
    %v2359 = vmul.f32 %v2336, %v2336
    %v2360 = vmul.f32 %v2337, %v2337
    %v2361 = vmul.f32 %v2338, %v2338
    %v2362 = vmul.f32 %v2339, %v2339
    %v2363 = vmul.f32 %v2340, %v2340
    %v2364 = vadd.f32 %v2357, %v2358
    %v2365 = vadd.f32 %v2364, %v2359
    %v2366 = vadd.f32 %v2365, %v2360
    %v2367 = vadd.f32 %v2366, %v2361
    %v2368 = vadd.f32 %v2367, %v2362
    %v2369 = vsel %vm527, %v2363, 0.0
    %v2370 = vadd.f32 %v2368, %v2369
    %2371 = vadd.xlane.f32.xlu0 %v2370
    %v2372 = vpop.xlane.xlu0 %2371
    %v2373 = vrot.slane %v2372, 4
    %v2374 = vadd.f32 %v2372, %v2373
    %v2375 = vrot.slane %v2374, 2
    %v2376 = vadd.f32 %v2374, %v2375
    %v2377 = vrot.slane %v2376, 1
    %v2378 = vadd.f32 %v2376, %v2377
    %s2379 = vtos %v2378
    %s2380 = smul.f32 %s2356, %s168
    %s2381 = smul.f32 %s2379, %s168
    %s2382 = smul.f32 %s2380, %s2380
    %s2383 = ssub.f32 %s2381, %s2382
    %v2384 = vstv %s2380
    %v2385 = vsub.f32 %v2327, %v2384
    %v2386 = vsub.f32 %v2328, %v2384
    %v2387 = vsub.f32 %v2329, %v2384
    %v2388 = vsub.f32 %v2330, %v2384
    %v2389 = vsub.f32 %v2331, %v2384
    %v2390 = vsub.f32 %v2332, %v2384
    %v2391 = vsub.f32 %v2333, %v2384
    %s2392 = sadd.f32 %s2383, 1e-05
    %v2393 = vstv %s2392
    %v2394 = vrsqrt.pop %v2393
    %s2395 = vtos %v2394
    %s2396 = smul.f32 %s2395, %s229
    %v2397 = vstv %s2396
    %v2398 = vmul.f32 %v2385, %v2397
    %v2399 = vmul.f32 %v2386, %v2397
    %v2400 = vmul.f32 %v2387, %v2397
    %v2401 = vmul.f32 %v2388, %v2397
    %v2402 = vmul.f32 %v2389, %v2397
    %v2403 = vmul.f32 %v2390, %v2397
    %v2404 = vmul.f32 %v2391, %v2397
    %v2405 = vstv %s231
    %v2406 = vadd.f32 %v2398, %v2405
    %v2407 = vadd.f32 %v2399, %v2405
    %v2408 = vadd.f32 %v2400, %v2405
    %v2409 = vadd.f32 %v2401, %v2405
    %v2410 = vadd.f32 %v2402, %v2405
    %v2411 = vadd.f32 %v2403, %v2405
    %v2412 = vadd.f32 %v2404, %v2405
    %v2413 = vtanh.pop %v2406
    %v2414 = vtanh.pop %v2407
    %v2415 = vtanh.pop %v2408
    %v2416 = vtanh.pop %v2409
    %v2417 = vtanh.pop %v2410
    %v2418 = vtanh.pop %v2411
    %v2419 = vtanh.pop %v2412
    %s2420 = scalar_lea.vmem %s13, 56
    %2421 = vst [vmem:[%s2420] sm:$0xff] %v2413
    %2422 = vst [vmem:[%s2420 + $0x8] sm:$0xff] %v2414
    %2423 = vst [vmem:[%s2420 + $0x10] sm:$0xff] %v2415
    %2424 = vst [vmem:[%s2420 + $0x18] sm:$0xff] %v2416
    %2425 = vst [vmem:[%s2420 + $0x20] sm:$0xff] %v2417
    %2426 = vst [vmem:[%s2420 + $0x28] sm:$0xff] %v2418
    %2427 = vst [vmem:[%s2420 + $0x30] sm:$0x1] %v2419
    %v2428 = vld [vmem:[%s11] sm:$0xff]
    %v2429 = vld [vmem:[%s11 + $0x8] sm:$0x3]
    %2431 = vset.pattern.permute.xlu0 0
    %2432 = vperm.xlu0 %2431, %v2428
    %v2433 = vpop.permute.xlu0 %2432
    %2436 = vset.pattern.permute.xlu0 0
    %2437 = vperm.xlu0 %2436, %v2429
    %v2438 = vpop.permute.xlu0 %2437
    %v2440 = vld [vmem:[%s10] sm:$0xff]
    %v2441 = vld [vmem:[%s10 + $0x8] sm:$0x3]
    %vm2442 = vcmask 400384
    %v2444 = vsel %vm2442, %v2440, 0
    %v2447 = vsel %vm2442, %v2441, 0
    %v2450 = vsel %vm527, %v2028, 0
    %2452 = vmatprep.subr.mxu0 0.0
    %2453 = vmatpush1.msra.mxu0 %v2022
    %2454 = vmatprep.subr.mxu0 0.0
    %2455 = vmatpush1.msra.mxu0 %v2023
    %2456 = vmatprep.subr.mxu0 0.0
    %2457 = vmatpush1.msra.mxu0 %v2024
    %2458 = vmatprep.subr.mxu0 0.0
    %2459 = vmatpush1.msra.mxu0 %v2025
    %2460 = vmatprep.subr.mxu0 0.0
    %2461 = vmatpush1.msra.mxu0 %v2026
    %2462 = vmatprep.subr.mxu0 0.0
    %2463 = vmatpush1.msra.mxu0 %v2027
    %2464 = vmatprep.subr.mxu0 0.0
    %2465 = vmatpush1.msra.mxu0 %v2450
    %2466 = vmatprep.subr.mxu0 0.0
    %2467 = vmatpush1.msra.mxu0 0.0
    %2468 = vmatprep.subr.mxu0 0.0
    %2469 = vmatpush1.msra.mxu0 0.0
    %2470 = vmatprep.subr.mxu0 0.0
    %2471 = vmatpush1.msra.mxu0 0.0
    %2472 = vmatprep.subr.mxu0 0.0
    %2473 = vmatpush1.msra.mxu0 0.0
    %2474 = vmatprep.subr.mxu0 0.0
    %2475 = vmatpush1.msra.mxu0 0.0
    %2476 = vmatprep.subr.mxu0 0.0
    %2477 = vmatpush1.msra.mxu0 0.0
    %2478 = vmatprep.subr.mxu0 0.0
    %2479 = vmatpush1.msra.mxu0 0.0
    %2480 = vmatprep.subr.mxu0 0.0
    %2481 = vmatpush1.msra.mxu0 0.0
    %2482 = vmatprep.subr.mxu0 0.0
    %2483 = vmatpush1.msra.mxu0 0.0
    %2484 = vmatprep.subr.mxu0 0.0
    %2485 = vmatpush1.msra.mxu0 0.0
    %2486 = vmatprep.subr.mxu0 0.0
    %2487 = vmatpush1.msra.mxu0 0.0
    %2488 = vmatprep.subr.mxu0 0.0
    %2489 = vmatpush1.msra.mxu0 0.0
    %2490 = vmatprep.subr.mxu0 0.0
    %2491 = vmatpush1.msra.mxu0 0.0
    %2492 = vmatprep.subr.mxu0 0.0
    %2493 = vmatpush1.msra.mxu0 0.0
    %2494 = vmatprep.subr.mxu0 0.0
    %2495 = vmatpush1.msra.mxu0 0.0
    %2496 = vmatprep.subr.mxu0 0.0
    %2497 = vmatpush1.msra.mxu0 0.0
    %2498 = vmatprep.subr.mxu0 0.0
    %2499 = vmatpush1.msra.mxu0 0.0
    %2500 = vmatprep.subr.mxu0 0.0
    %2501 = vmatpush1.msra.mxu0 0.0
    %2502 = vmatprep.subr.mxu0 0.0
    %2503 = vmatpush1.msra.mxu0 0.0
    %2504 = vmatprep.subr.mxu0 0.0
    %2505 = vmatpush1.msra.mxu0 0.0
    %2506 = vmatprep.subr.mxu0 0.0
    %2507 = vmatpush1.msra.mxu0 0.0
    %2508 = vmatprep.subr.mxu0 0.0
    %2509 = vmatpush1.msra.mxu0 0.0
    %2510 = vmatprep.subr.mxu0 0.0
    %2511 = vmatpush1.msra.mxu0 0.0
    %2512 = vmatprep.subr.mxu0 0.0
    %2513 = vmatpush1.msra.mxu0 0.0
    %2514 = vmatprep.subr.mxu0 0.0
    %2515 = vmatpush1.msra.mxu0 0.0
    %2516 = vmatprep.mubr.f32.mxu0 0.0
    %2517 = vmatmul.mubr.f32.gmra.mrb[0].mxu0 %v2444
    %v2518 = vpop.f32.mrb[0].mxu0
    %v2519 = vadd.f32 0.0, %v2518
    %v2520 = vpop.f32.mrb[0].mxu0
    %2521 = vmatprep.mubr.f32.mxu0 0.0
    %2522 = vmatmul.mubr.f32.gmra.mrb[0].mxu0 %v2447
    %v2523 = vpop.f32.mrb[0].mxu0
    %v2524 = vadd.f32 0.0, %v2523
    %v2525 = vpop.f32.mrb[0].mxu0
    %2526 = vdwg.mxu0
    %v2527 = vadd.f32 %v2433, %v2519
    %v2528 = vadd.f32 %v2438, %v2524
    %s2529 = scalar_lea.vmem %s10, 16
    %v2530 = vld [vmem:[%s2529] sm:$0xff]
    %v2531 = vld [vmem:[%s2529 + $0x8] sm:$0x3]
    %v2533 = vsel %vm2442, %v2530, 0
    %v2536 = vsel %vm2442, %v2531, 0
    %v2539 = vsel %vm527, %v2419, 0
    %2541 = vmatprep.subr.mxu0 0.0
    %2542 = vmatpush1.msra.mxu0 %v2413
    %2543 = vmatprep.subr.mxu0 0.0
    %2544 = vmatpush1.msra.mxu0 %v2414
    %2545 = vmatprep.subr.mxu0 0.0
    %2546 = vmatpush1.msra.mxu0 %v2415
    %2547 = vmatprep.subr.mxu0 0.0
    %2548 = vmatpush1.msra.mxu0 %v2416
    %2549 = vmatprep.subr.mxu0 0.0
    %2550 = vmatpush1.msra.mxu0 %v2417
    %2551 = vmatprep.subr.mxu0 0.0
    %2552 = vmatpush1.msra.mxu0 %v2418
    %2553 = vmatprep.subr.mxu0 0.0
    %2554 = vmatpush1.msra.mxu0 %v2539
    %2555 = vmatprep.subr.mxu0 0.0
    %2556 = vmatpush1.msra.mxu0 0.0
    %2557 = vmatprep.subr.mxu0 0.0
    %2558 = vmatpush1.msra.mxu0 0.0
    %2559 = vmatprep.subr.mxu0 0.0
    %2560 = vmatpush1.msra.mxu0 0.0
    %2561 = vmatprep.subr.mxu0 0.0
    %2562 = vmatpush1.msra.mxu0 0.0
    %2563 = vmatprep.subr.mxu0 0.0
    %2564 = vmatpush1.msra.mxu0 0.0
    %2565 = vmatprep.subr.mxu0 0.0
    %2566 = vmatpush1.msra.mxu0 0.0
    %2567 = vmatprep.subr.mxu0 0.0
    %2568 = vmatpush1.msra.mxu0 0.0
    %2569 = vmatprep.subr.mxu0 0.0
    %2570 = vmatpush1.msra.mxu0 0.0
    %2571 = vmatprep.subr.mxu0 0.0
    %2572 = vmatpush1.msra.mxu0 0.0
    %2573 = vmatprep.subr.mxu0 0.0
    %2574 = vmatpush1.msra.mxu0 0.0
    %2575 = vmatprep.subr.mxu0 0.0
    %2576 = vmatpush1.msra.mxu0 0.0
    %2577 = vmatprep.subr.mxu0 0.0
    %2578 = vmatpush1.msra.mxu0 0.0
    %2579 = vmatprep.subr.mxu0 0.0
    %2580 = vmatpush1.msra.mxu0 0.0
    %2581 = vmatprep.subr.mxu0 0.0
    %2582 = vmatpush1.msra.mxu0 0.0
    %2583 = vmatprep.subr.mxu0 0.0
    %2584 = vmatpush1.msra.mxu0 0.0
    %2585 = vmatprep.subr.mxu0 0.0
    %2586 = vmatpush1.msra.mxu0 0.0
    %2587 = vmatprep.subr.mxu0 0.0
    %2588 = vmatpush1.msra.mxu0 0.0
    %2589 = vmatprep.subr.mxu0 0.0
    %2590 = vmatpush1.msra.mxu0 0.0
    %2591 = vmatprep.subr.mxu0 0.0
    %2592 = vmatpush1.msra.mxu0 0.0
    %2593 = vmatprep.subr.mxu0 0.0
    %2594 = vmatpush1.msra.mxu0 0.0
    %2595 = vmatprep.subr.mxu0 0.0
    %2596 = vmatpush1.msra.mxu0 0.0
    %2597 = vmatprep.subr.mxu0 0.0
    %2598 = vmatpush1.msra.mxu0 0.0
    %2599 = vmatprep.subr.mxu0 0.0
    %2600 = vmatpush1.msra.mxu0 0.0
    %2601 = vmatprep.subr.mxu0 0.0
    %2602 = vmatpush1.msra.mxu0 0.0
    %2603 = vmatprep.subr.mxu0 0.0
    %2604 = vmatpush1.msra.mxu0 0.0
    %2605 = vmatprep.mubr.f32.mxu0 0.0
    %2606 = vmatmul.mubr.f32.gmra.mrb[0].mxu0 %v2533
    %v2607 = vpop.f32.mrb[0].mxu0
    %v2608 = vadd.f32 0.0, %v2607
    %v2609 = vpop.f32.mrb[0].mxu0
    %2610 = vmatprep.mubr.f32.mxu0 0.0
    %2611 = vmatmul.mubr.f32.gmra.mrb[0].mxu0 %v2536
    %v2612 = vpop.f32.mrb[0].mxu0
    %v2613 = vadd.f32 0.0, %v2612
    %v2614 = vpop.f32.mrb[0].mxu0
    %2615 = vdwg.mxu0
    %v2616 = vadd.f32 %v2527, %v2608
    %v2617 = vadd.f32 %v2528, %v2613
    %2618 = vst [vmem:[#allocation17] sm:$0xff] %v2616
    %2619 = vst [vmem:[#allocation17 + $0x8] sm:$0x3] %v2617
    // Predicated region
    $region82: #{tpu_custom_call.1} parent=1 // pred_check
      _
    $region83: #{tpu_custom_call.1} parent=1 // pred_check_branch
      %2621 = sbr.rel (0) target = $region85
    $region84: #{tpu_custom_call.1} parent=1 // pred_region
      %s2623 = ssub.s32 256, 256
      %2624 = vsyncadd [#allocation4], %s2623
      %s2625 = sshll.u32 [#allocation17], 4
      %s2626 = int_to_ptr.vmem [resolvable:$true] %s2625
      %2631 = dma.vmem_to_hbm [thread:$0]  %s2626, 256, %s12, [#allocation4], 128, 128, 8
    $region85: #{tpu_custom_call.1} parent=1 // pred_fallthru
      _
    // Predicated region
    $region86: #{tpu_custom_call.1} parent=1 // pred_check
      _
    $region87: #{tpu_custom_call.1} parent=1 // pred_check_branch
      %2633 = sbr.rel (0) target = $region89
    $region88: #{tpu_custom_call.1} parent=1 // pred_region
      _
    $region89: #{tpu_custom_call.1} parent=1 // pred_fallthru
      _
    // Predicated region
    $region90: #{tpu_custom_call.1} parent=1 // pred_check
      _
    $region91: #{tpu_custom_call.1} parent=1 // pred_check_branch
      %2635 = sbr.rel (0) target = $region93
    $region92: #{tpu_custom_call.1} parent=1 // pred_region
      %s2637 = ssub.s32 2688, 2688
      %2638 = vsyncadd [#allocation19], %s2637
      %s2639 = sshll.u32 [#allocation18], 4
      %s2640 = int_to_ptr.vmem [resolvable:$true] %s2639
      %2645 = dma.vmem_to_hbm [thread:$0]  %s2640, 2688, %s14, [#allocation19], 128, 128, 8
    $region93: #{tpu_custom_call.1} parent=1 // pred_fallthru
      _
    // Predicated region
    $region94: #{tpu_custom_call.1} parent=1 // pred_check
      _
    $region95: #{tpu_custom_call.1} parent=1 // pred_check_branch
      %2647 = sbr.rel (0) target = $region97
    $region96: #{tpu_custom_call.1} parent=1 // pred_region
      %2648 = dma.done [#allocation4], 256
    $region97: #{tpu_custom_call.1} parent=1 // pred_fallthru
      _
    // Predicated region
    $region98: #{tpu_custom_call.1} parent=1 // pred_check
      _
    $region99: #{tpu_custom_call.1} parent=1 // pred_check_branch
      %2650 = sbr.rel (0) target = $region101
    $region100: #{tpu_custom_call.1} parent=1 // pred_region
      _
    $region101: #{tpu_custom_call.1} parent=1 // pred_fallthru
      _
    // Predicated region
    $region102: #{tpu_custom_call.1} parent=1 // pred_check
      _
    $region103: #{tpu_custom_call.1} parent=1 // pred_check_branch
      %2652 = sbr.rel (0) target = $region105
    $region104: #{tpu_custom_call.1} parent=1 // pred_region
      %2653 = dma.done [#allocation19], 2688
    $region105: #{tpu_custom_call.1} parent=1 // pred_fallthru
      _
    %2654 = vsyncpa [#allocation4], 1
    %2655 = vsyncpa [#allocation19], 1
    %2656 = vsyncpa [#allocation5], 1
    %2657 = vsyncpa [#allocation7], 1
    %2658 = vsyncpa [#allocation10], 1
    %2659 = vsyncpa [#allocation13], 1
    %2660 = vsyncpa [#allocation16], 1

</llo_original>
